<compile_context>
chip_gen: v7x
topology: tpu7x:2x2x1
jax: 0.10.0
libtpu: 0.0.40
codegen_flags: <defaults>
</compile_context>

<pallas_src>
import functools

import jax
import jax.numpy as jnp
from jax import lax
from jax.experimental import pallas as pl
from jax.experimental.pallas import tpu as pltpu


def _layernorm(z, eps=1e-5):
    # LayerNorm with elementwise_affine=False: biased variance over last dim
    # (matches torch.nn.LayerNorm defaults).
    mu = jnp.mean(z, axis=-1, keepdims=True)
    zc = z - mu
    var = jnp.mean(zc * zc, axis=-1, keepdims=True)
    return zc * lax.rsqrt(var + eps)


def encoder_layer_kernel(x_ref, wqkv_ref, wo_ref, w1_ref, w2_ref,
                         o_ref,
                         qkvh_ref, att_ref,
                         *, heads, d_k, d_v, alpha):
    d_kqv = 2 * d_k + d_v
    x = x_ref[0]                                       # (n, d_model), caller dtype

    # ---- Fused QKV projection: one full-width MXU contraction, f32 acc.
    qkv = jnp.dot(x, wqkv_ref[...],
                  preferred_element_type=jnp.float32)  # (n, H*d_kqv)

    # ---- Head-major relayout: `heads` stores of a (n, d_kqv) slab into one
    #      scratch buffer (cheap relayout; attention below is batched over the
    #      head axis, not Python-unrolled matmuls).
    for h in range(heads):
        qkvh_ref[h] = qkv[:, h * d_kqv:(h + 1) * d_kqv].astype(qkvh_ref.dtype)

    qkvh = qkvh_ref[...]                               # (H, n, d_kqv)
    qh = qkvh[:, :, :d_k]                              # (H, n, d_k)
    kh = qkvh[:, :, d_k:2 * d_k]                       # (H, n, d_k)
    vh = qkvh[:, :, 2 * d_k:]                          # (H, n, d_v)

    # ---- Batched attention over heads.  NOTE: no 1/sqrt(d_k) scaling, by
    #      design of the reference module.  Softmax math in f32.
    logits = jnp.einsum('hqd,hkd->hqk', qh, kh,
                        preferred_element_type=jnp.float32)            # (H, n, n)
    m = jnp.max(logits, axis=-1, keepdims=True)
    p = jnp.exp(logits - m)
    denom = jnp.sum(p, axis=-1, keepdims=True)
    # Approximate reciprocal runs on the EUP slot -> avoids a full-width divide.
    w = p * pl.reciprocal(denom, approx=True)
    att = jnp.einsum('hqk,hkd->hqd', w.astype(vh.dtype), vh,
                     preferred_element_type=jnp.float32)               # (H, n, d_v)

    # ---- Repack heads lane-packed into (n, H*d_v) scratch, then ONE
    #      full-width output-projection matmul (contraction = heads*d_v).
    for h in range(heads):
        att_ref[:, h * d_v:(h + 1) * d_v] = att[h].astype(att_ref.dtype)
    att_proj = jnp.dot(att_ref[...], wo_ref[...],
                       preferred_element_type=jnp.float32)             # (n, d_model)

    # ---- Residual + LayerNorm (dropout == identity at inference), f32 math.
    xf = x.astype(jnp.float32)
    att_in = xf + att_proj if alpha == 1.0 else xf * alpha + att_proj
    att_result = _layernorm(att_in)

    # ---- Feed-forward: ReLU(att @ W1) @ W2, f32 accumulation.
    h1 = jnp.dot(att_result.astype(w1_ref.dtype), w1_ref[...],
                 preferred_element_type=jnp.float32)
    h1 = jnp.maximum(h1, 0.0)
    ff = jnp.dot(h1.astype(w2_ref.dtype), w2_ref[...],
                 preferred_element_type=jnp.float32)

    ff_in = att_result + ff if alpha == 1.0 else att_result * alpha + ff
    o_ref[0] = _layernorm(ff_in).astype(o_ref.dtype)


def encoder_layer(x_nbc, wqkv, wout, w1, w2, *, heads, d_k, d_v, alpha=1.0):
    """x_nbc: (n, b, d_model); weights in the PyTorch module's native layout."""
    n, b, d_model = x_nbc.shape
    d_kqv = 2 * d_k + d_v
    d_ff = w1.shape[0]
    assert wqkv.shape == (heads * d_kqv, d_model)
    assert wout.shape == (d_model, heads * d_v)
    assert w1.shape == (d_ff, d_model)
    assert w2.shape == (d_model, d_ff)

    # One-time weight relayout OUTSIDE the kernel to (in, out) row-major.
    # project_qkv.weight rows are already head-major [q_h|k_h|v_h] blocks, so
    # the transpose alone gives the packed matrix the fused QKV matmul wants.
    wqkv_t = wqkv.T                                   # (d_model, H*d_kqv)
    wo_t = wout.T                                     # (H*d_v, d_model)
    w1_t = w1.T                                       # (d_model, d_ff)
    w2_t = w2.T                                       # (d_ff, d_model)

    # Batch-major layout: each grid step gets one batch element's sequence as
    # a lane-dense (n, d_model) tile whose last two block dims are full dims.
    x_bnc = jnp.transpose(x_nbc, (1, 0, 2))           # (b, n, d_model)

    kernel = functools.partial(encoder_layer_kernel,
                               heads=heads, d_k=d_k, d_v=d_v, alpha=alpha)

    out_bnc = pl.pallas_call(
        kernel,
        out_shape=jax.ShapeDtypeStruct((b, n, d_model), x_nbc.dtype),
        grid_spec=pltpu.PrefetchScalarGridSpec(
            num_scalar_prefetch=0,
            grid=(b,),
            in_specs=[
                pl.BlockSpec((1, n, d_model), lambda i: (i, 0, 0)),        # x
                pl.BlockSpec((d_model, heads * d_kqv), lambda i: (0, 0)),  # Wqkv
                pl.BlockSpec((heads * d_v, d_model), lambda i: (0, 0)),    # Wout
                pl.BlockSpec((d_model, d_ff), lambda i: (0, 0)),           # W1
                pl.BlockSpec((d_ff, d_model), lambda i: (0, 0)),           # W2
            ],
            out_specs=pl.BlockSpec((1, n, d_model), lambda i: (i, 0, 0)),
            scratch_shapes=[
                pltpu.VMEM((heads, n, d_kqv), x_nbc.dtype),   # head-major qkv
                pltpu.VMEM((n, heads * d_v), x_nbc.dtype),    # attn out, lane-packed
            ],
        ),
        compiler_params=pltpu.CompilerParams(
            dimension_semantics=("parallel",),    # batch axis -> megacore / 2 TCs
            vmem_limit_bytes=32 * 1024 * 1024,
        ),
    )(x_bnc, wqkv_t, wo_t, w1_t, w2_t)

    return jnp.transpose(out_bnc, (1, 0, 2))      # back to (n, b, d_model)


def encoder_layer_reference(x_nbc, wqkv, wout, w1, w2, *, heads, d_k, d_v, alpha=1.0):
    """Pure-JAX reference mirroring the PyTorch forward (eval / no dropout)."""
    n, b, c = x_nbc.shape
    d_kqv = 2 * d_k + d_v
    x2 = x_nbc.reshape(n * b, c)
    qkv = (x2 @ wqkv.T).reshape(n, b * heads, d_kqv)
    q = qkv[:, :, :d_k]
    k = qkv[:, :, d_k:2 * d_k]
    v = qkv[:, :, 2 * d_k:]
    logits = jnp.einsum('nhd,mhd->hnm', q, k)           # (b*heads, n, n), no scaling
    w = jax.nn.softmax(logits, axis=-1)
    att = jnp.einsum('hnm,mhd->nhd', w, v)              # (n, b*heads, d_v)
    att_viewed = att.reshape(n * b, heads * d_v)
    att_proj = (att_viewed @ wout.T).reshape(n, b, c)

    def ln(z):
        mu = z.mean(-1, keepdims=True)
        var = ((z - mu) ** 2).mean(-1, keepdims=True)
        return (z - mu) / jnp.sqrt(var + 1e-5)

    att_result = ln(x_nbc * alpha + att_proj)
    h1 = jnp.maximum(att_result.reshape(n * b, c) @ w1.T, 0.0)
    ff = (h1 @ w2.T).reshape(n, b, c)
    return ln(att_result * alpha + ff)


if __name__ == "__main__":
    # Small shapes consistent with the module.
    n, b = 8, 2
    heads, d_k, d_v = 4, 8, 8
    d_model = 32
    d_ff = 64
    alpha = 1.0
    d_kqv = 2 * d_k + d_v

    key = jax.random.PRNGKey(0)
    kx, k1, k2, k3, k4 = jax.random.split(key, 5)

    x = jax.random.normal(kx, (n, b, d_model), dtype=jnp.float32)

    # Deterministic xavier-like parameter init (shapes from __init__).
    def xavier(k, shape, gain=1.0):
        fan_out, fan_in = shape
        std = gain * (2.0 / (fan_in + fan_out)) ** 0.5
        return std * jax.random.normal(k, shape, dtype=jnp.float32)

    wqkv = xavier(k1, (heads * d_kqv, d_model))          # project_qkv.weight
    wout = xavier(k2, (d_model, heads * d_v))            # project_out.weight
    w1 = xavier(k3, (d_ff, d_model))                     # ff[0].weight
    w2 = xavier(k4, (d_model, d_ff))                     # ff[2].weight

    out = encoder_layer(x, wqkv, wout, w1, w2,
                        heads=heads, d_k=d_k, d_v=d_v, alpha=alpha)
    out = jax.block_until_ready(out)

    ref = encoder_layer_reference(x, wqkv, wout, w1, w2,
                                  heads=heads, d_k=d_k, d_v=d_v, alpha=alpha)
    assert out.shape == (n, b, d_model)
    # Tolerance accounts for the EUP approximate reciprocal used in the softmax
    # normalisation (~1e-3 relative); everything else is exact f32 math.
    assert jnp.allclose(out, ref, atol=1e-2, rtol=1e-2), "mismatch vs reference"

    print("KERNEL_OK")
</pallas_src>

<mosaic_0001>
module attributes {stable_mosaic.version = 11 : i64} {
  func.func @encoder_layer_kernel(%arg0: i32, %arg1: memref<1x8x32xf32, #tpu.memory_space<vmem>>, %arg2: memref<32x96xf32, #tpu.memory_space<vmem>>, %arg3: memref<32x32xf32, #tpu.memory_space<vmem>>, %arg4: memref<32x64xf32, #tpu.memory_space<vmem>>, %arg5: memref<64x32xf32, #tpu.memory_space<vmem>>, %arg6: memref<1x8x32xf32, #tpu.memory_space<vmem>>, %arg7: memref<4x8x24xf32, #tpu.memory_space<vmem>>, %arg8: memref<8x32xf32, #tpu.memory_space<vmem>>) attributes {dimension_semantics = [#tpu.dimension_semantics<parallel>], iteration_bounds = array<i64: 2>, scalar_prefetch = 0 : i64, scratch_operands = 2 : i64, tpu.core_type = #tpu.core_type<tc>, window_params = [{transform_indices = @transform_0, window_bounds = array<i64: 1, 8, 32>}, {pipeline_mode = #tpu.pipeline_mode<synchronous>, transform_indices = @transform_1, window_bounds = array<i64: 32, 96>}, {pipeline_mode = #tpu.pipeline_mode<synchronous>, transform_indices = @transform_2, window_bounds = array<i64: 32, 32>}, {pipeline_mode = #tpu.pipeline_mode<synchronous>, transform_indices = @transform_3, window_bounds = array<i64: 32, 64>}, {pipeline_mode = #tpu.pipeline_mode<synchronous>, transform_indices = @transform_4, window_bounds = array<i64: 64, 32>}, {transform_indices = @transform_5, window_bounds = array<i64: 1, 8, 32>}]} {
    %c0 = arith.constant 0 : index
    %c0_0 = arith.constant 0 : index
    %c0_1 = arith.constant 0 : index
    %0 = vector.load %arg1[%c0, %c0_0, %c0_1] : memref<1x8x32xf32, #tpu.memory_space<vmem>>, vector<1x8x32xf32>
    %1 = vector.shape_cast %0 : vector<1x8x32xf32> to vector<8x32xf32>
    %c0_2 = arith.constant 0 : index
    %c0_3 = arith.constant 0 : index
    %2 = vector.load %arg2[%c0_2, %c0_3] : memref<32x96xf32, #tpu.memory_space<vmem>>, vector<32x96xf32>
    %cst = arith.constant dense<0.000000e+00> : vector<8x96xf32>
    %3 = tpu.matmul %1, %2, %cst {dimension_numbers = #tpu.dot_dimension_numbers<[1], [0], [0], [1], [0, 0, 1, 1], [], []>} : vector<8x32xf32>, vector<32x96xf32>, vector<8x96xf32> -> vector<8x96xf32>
    %4 = vector.extract_strided_slice %3 {offsets = [0, 0], sizes = [8, 24], strides = [1, 1]} : vector<8x96xf32> to vector<8x24xf32>
    %c0_4 = arith.constant 0 : index
    %c0_5 = arith.constant 0 : index
    %c0_6 = arith.constant 0 : index
    %5 = vector.load %arg7[%c0_4, %c0_5, %c0_6] : memref<4x8x24xf32, #tpu.memory_space<vmem>>, vector<1x8x24xf32>
    %6 = vector.shape_cast %5 : vector<1x8x24xf32> to vector<8x24xf32>
    %7 = vector.shape_cast %4 : vector<8x24xf32> to vector<1x8x24xf32>
    tpu.vector_store %arg7[%c0_4, %c0_5, %c0_6], %7 {strides = array<i32>} : memref<4x8x24xf32, #tpu.memory_space<vmem>>, vector<1x8x24xf32>,
    %8 = vector.extract_strided_slice %3 {offsets = [0, 24], sizes = [8, 24], strides = [1, 1]} : vector<8x96xf32> to vector<8x24xf32>
    %c1 = arith.constant 1 : index
    %c0_7 = arith.constant 0 : index
    %c0_8 = arith.constant 0 : index
    %9 = vector.load %arg7[%c1, %c0_7, %c0_8] : memref<4x8x24xf32, #tpu.memory_space<vmem>>, vector<1x8x24xf32>
    %10 = vector.shape_cast %9 : vector<1x8x24xf32> to vector<8x24xf32>
    %11 = vector.shape_cast %8 : vector<8x24xf32> to vector<1x8x24xf32>
    tpu.vector_store %arg7[%c1, %c0_7, %c0_8], %11 {strides = array<i32>} : memref<4x8x24xf32, #tpu.memory_space<vmem>>, vector<1x8x24xf32>,
    %12 = vector.extract_strided_slice %3 {offsets = [0, 48], sizes = [8, 24], strides = [1, 1]} : vector<8x96xf32> to vector<8x24xf32>
    %c2 = arith.constant 2 : index
    %c0_9 = arith.constant 0 : index
    %c0_10 = arith.constant 0 : index
    %13 = vector.load %arg7[%c2, %c0_9, %c0_10] : memref<4x8x24xf32, #tpu.memory_space<vmem>>, vector<1x8x24xf32>
    %14 = vector.shape_cast %13 : vector<1x8x24xf32> to vector<8x24xf32>
    %15 = vector.shape_cast %12 : vector<8x24xf32> to vector<1x8x24xf32>
    tpu.vector_store %arg7[%c2, %c0_9, %c0_10], %15 {strides = array<i32>} : memref<4x8x24xf32, #tpu.memory_space<vmem>>, vector<1x8x24xf32>,
    %16 = vector.extract_strided_slice %3 {offsets = [0, 72], sizes = [8, 24], strides = [1, 1]} : vector<8x96xf32> to vector<8x24xf32>
    %c3 = arith.constant 3 : index
    %c0_11 = arith.constant 0 : index
    %c0_12 = arith.constant 0 : index
    %17 = vector.load %arg7[%c3, %c0_11, %c0_12] : memref<4x8x24xf32, #tpu.memory_space<vmem>>, vector<1x8x24xf32>
    %18 = vector.shape_cast %17 : vector<1x8x24xf32> to vector<8x24xf32>
    %19 = vector.shape_cast %16 : vector<8x24xf32> to vector<1x8x24xf32>
    tpu.vector_store %arg7[%c3, %c0_11, %c0_12], %19 {strides = array<i32>} : memref<4x8x24xf32, #tpu.memory_space<vmem>>, vector<1x8x24xf32>,
    %c0_13 = arith.constant 0 : index
    %c0_14 = arith.constant 0 : index
    %c0_15 = arith.constant 0 : index
    %20 = vector.load %arg7[%c0_13, %c0_14, %c0_15] : memref<4x8x24xf32, #tpu.memory_space<vmem>>, vector<4x8x24xf32>
    %21 = vector.extract_strided_slice %20 {offsets = [0, 0, 0], sizes = [4, 8, 8], strides = [1, 1, 1]} : vector<4x8x24xf32> to vector<4x8x8xf32>
    %22 = vector.extract_strided_slice %20 {offsets = [0, 0, 8], sizes = [4, 8, 8], strides = [1, 1, 1]} : vector<4x8x24xf32> to vector<4x8x8xf32>
    %23 = vector.extract_strided_slice %20 {offsets = [0, 0, 16], sizes = [4, 8, 8], strides = [1, 1, 1]} : vector<4x8x24xf32> to vector<4x8x8xf32>
    "tpu.trace_start"() <{level = 10 : i32, message = "hqd,hkd->hqk"}> : () -> ()
    %cst_16 = arith.constant dense<0.000000e+00> : vector<4x8x8xf32>
    %24 = tpu.matmul %21, %22, %cst_16 {dimension_numbers = #tpu.dot_dimension_numbers<[2], [2], [1], [1], [0, 0, 0, 1, 1, 1], [0], [0]>} : vector<4x8x8xf32>, vector<4x8x8xf32>, vector<4x8x8xf32> -> vector<4x8x8xf32>
    "tpu.trace_stop"() : () -> ()
    %cst_17 = arith.constant dense<0xFF800000> : vector<4x8xf32>
    %25 = vector.multi_reduction <maximumf>, %24, %cst_17 [2] : vector<4x8x8xf32> to vector<4x8xf32>
    %26 = vector.shape_cast %25 : vector<4x8xf32> to vector<4x8x1xf32>
    %27 = vector.broadcast %26 : vector<4x8x1xf32> to vector<4x8x8xf32>
    %28 = arith.subf %24, %27 : vector<4x8x8xf32>
    %29 = math.exp %28 : vector<4x8x8xf32>
    %cst_18 = arith.constant dense<0.000000e+00> : vector<4x8xf32>
    %30 = vector.multi_reduction <add>, %29, %cst_18 [2] : vector<4x8x8xf32> to vector<4x8xf32>
    %31 = vector.shape_cast %30 : vector<4x8xf32> to vector<4x8x1xf32>
    %32 = tpu.reciprocal %31 {approx = true} : vector<4x8x1xf32> -> vector<4x8x1xf32>
    %33 = vector.broadcast %32 : vector<4x8x1xf32> to vector<4x8x8xf32>
    %34 = arith.mulf %29, %33 : vector<4x8x8xf32>
    "tpu.trace_start"() <{level = 10 : i32, message = "hqk,hkd->hqd"}> : () -> ()
    %cst_19 = arith.constant dense<0.000000e+00> : vector<4x8x8xf32>
    %35 = tpu.matmul %34, %23, %cst_19 {dimension_numbers = #tpu.dot_dimension_numbers<[2], [1], [1], [2], [0, 0, 0, 1, 1, 2], [0], [0]>} : vector<4x8x8xf32>, vector<4x8x8xf32>, vector<4x8x8xf32> -> vector<4x8x8xf32>
    "tpu.trace_stop"() : () -> ()
    %36 = vector.extract_strided_slice %35 {offsets = [0, 0, 0], sizes = [1, 8, 8], strides = [1, 1, 1]} : vector<4x8x8xf32> to vector<1x8x8xf32>
    %37 = vector.shape_cast %36 : vector<1x8x8xf32> to vector<8x8xf32>
    %c0_20 = arith.constant 0 : index
    %c0_21 = arith.constant 0 : index
    %38 = vector.load %arg8[%c0_20, %c0_21] : memref<8x32xf32, #tpu.memory_space<vmem>>, vector<8x8xf32>
    tpu.vector_store %arg8[%c0_20, %c0_21], %37 {strides = array<i32>} : memref<8x32xf32, #tpu.memory_space<vmem>>, vector<8x8xf32>,
    %39 = vector.extract_strided_slice %35 {offsets = [1, 0, 0], sizes = [1, 8, 8], strides = [1, 1, 1]} : vector<4x8x8xf32> to vector<1x8x8xf32>
    %40 = vector.shape_cast %39 : vector<1x8x8xf32> to vector<8x8xf32>
    %c0_22 = arith.constant 0 : index
    %c8 = arith.constant 8 : index
    %41 = vector.load %arg8[%c0_22, %c8] : memref<8x32xf32, #tpu.memory_space<vmem>>, vector<8x8xf32>
    tpu.vector_store %arg8[%c0_22, %c8], %40 {strides = array<i32>} : memref<8x32xf32, #tpu.memory_space<vmem>>, vector<8x8xf32>,
    %42 = vector.extract_strided_slice %35 {offsets = [2, 0, 0], sizes = [1, 8, 8], strides = [1, 1, 1]} : vector<4x8x8xf32> to vector<1x8x8xf32>
    %43 = vector.shape_cast %42 : vector<1x8x8xf32> to vector<8x8xf32>
    %c0_23 = arith.constant 0 : index
    %c16 = arith.constant 16 : index
    %44 = vector.load %arg8[%c0_23, %c16] : memref<8x32xf32, #tpu.memory_space<vmem>>, vector<8x8xf32>
    tpu.vector_store %arg8[%c0_23, %c16], %43 {strides = array<i32>} : memref<8x32xf32, #tpu.memory_space<vmem>>, vector<8x8xf32>,
    %45 = vector.extract_strided_slice %35 {offsets = [3, 0, 0], sizes = [1, 8, 8], strides = [1, 1, 1]} : vector<4x8x8xf32> to vector<1x8x8xf32>
    %46 = vector.shape_cast %45 : vector<1x8x8xf32> to vector<8x8xf32>
    %c0_24 = arith.constant 0 : index
    %c24 = arith.constant 24 : index
    %47 = vector.load %arg8[%c0_24, %c24] : memref<8x32xf32, #tpu.memory_space<vmem>>, vector<8x8xf32>
    tpu.vector_store %arg8[%c0_24, %c24], %46 {strides = array<i32>} : memref<8x32xf32, #tpu.memory_space<vmem>>, vector<8x8xf32>,
    %c0_25 = arith.constant 0 : index
    %c0_26 = arith.constant 0 : index
    %48 = vector.load %arg8[%c0_25, %c0_26] : memref<8x32xf32, #tpu.memory_space<vmem>>, vector<8x32xf32>
    %c0_27 = arith.constant 0 : index
    %c0_28 = arith.constant 0 : index
    %49 = vector.load %arg3[%c0_27, %c0_28] : memref<32x32xf32, #tpu.memory_space<vmem>>, vector<32x32xf32>
    %cst_29 = arith.constant dense<0.000000e+00> : vector<8x32xf32>
    %50 = tpu.matmul %48, %49, %cst_29 {dimension_numbers = #tpu.dot_dimension_numbers<[1], [0], [0], [1], [0, 0, 1, 1], [], []>} : vector<8x32xf32>, vector<32x32xf32>, vector<8x32xf32> -> vector<8x32xf32>
    %51 = arith.addf %1, %50 : vector<8x32xf32>
    %cst_30 = arith.constant dense<0.000000e+00> : vector<8xf32>
    %52 = vector.multi_reduction <add>, %51, %cst_30 [1] : vector<8x32xf32> to vector<8xf32>
    %53 = vector.shape_cast %52 : vector<8xf32> to vector<8x1xf32>
    %cst_31 = arith.constant 3.200000e+01 : f32
    %54 = vector.broadcast %cst_31 : f32 to vector<8x1xf32>
    %55 = arith.divf %53, %54 : vector<8x1xf32>
    %56 = vector.broadcast %55 : vector<8x1xf32> to vector<8x32xf32>
    %57 = arith.subf %51, %56 : vector<8x32xf32>
    %58 = arith.mulf %57, %57 : vector<8x32xf32>
    %cst_32 = arith.constant dense<0.000000e+00> : vector<8xf32>
    %59 = vector.multi_reduction <add>, %58, %cst_32 [1] : vector<8x32xf32> to vector<8xf32>
    %60 = vector.shape_cast %59 : vector<8xf32> to vector<8x1xf32>
    %cst_33 = arith.constant 3.200000e+01 : f32
    %61 = vector.broadcast %cst_33 : f32 to vector<8x1xf32>
    %62 = arith.divf %60, %61 : vector<8x1xf32>
    %cst_34 = arith.constant 9.99999974E-6 : f32
    %63 = vector.broadcast %cst_34 : f32 to vector<8x1xf32>
    %64 = arith.addf %62, %63 : vector<8x1xf32>
    %65 = math.rsqrt %64 : vector<8x1xf32>
    %66 = vector.broadcast %65 : vector<8x1xf32> to vector<8x32xf32>
    %67 = arith.mulf %57, %66 : vector<8x32xf32>
    %c0_35 = arith.constant 0 : index
    %c0_36 = arith.constant 0 : index
    %68 = vector.load %arg4[%c0_35, %c0_36] : memref<32x64xf32, #tpu.memory_space<vmem>>, vector<32x64xf32>
    %cst_37 = arith.constant dense<0.000000e+00> : vector<8x64xf32>
    %69 = tpu.matmul %67, %68, %cst_37 {dimension_numbers = #tpu.dot_dimension_numbers<[1], [0], [0], [1], [0, 0, 1, 1], [], []>} : vector<8x32xf32>, vector<32x64xf32>, vector<8x64xf32> -> vector<8x64xf32>
    %cst_38 = arith.constant 0.000000e+00 : f32
    %70 = vector.broadcast %cst_38 : f32 to vector<8x64xf32>
    %71 = arith.maximumf %69, %70 : vector<8x64xf32>
    %c0_39 = arith.constant 0 : index
    %c0_40 = arith.constant 0 : index
    %72 = vector.load %arg5[%c0_39, %c0_40] : memref<64x32xf32, #tpu.memory_space<vmem>>, vector<64x32xf32>
    %cst_41 = arith.constant dense<0.000000e+00> : vector<8x32xf32>
    %73 = tpu.matmul %71, %72, %cst_41 {dimension_numbers = #tpu.dot_dimension_numbers<[1], [0], [0], [1], [0, 0, 1, 1], [], []>} : vector<8x64xf32>, vector<64x32xf32>, vector<8x32xf32> -> vector<8x32xf32>
    %74 = arith.addf %67, %73 : vector<8x32xf32>
    %cst_42 = arith.constant dense<0.000000e+00> : vector<8xf32>
    %75 = vector.multi_reduction <add>, %74, %cst_42 [1] : vector<8x32xf32> to vector<8xf32>
    %76 = vector.shape_cast %75 : vector<8xf32> to vector<8x1xf32>
    %cst_43 = arith.constant 3.200000e+01 : f32
    %77 = vector.broadcast %cst_43 : f32 to vector<8x1xf32>
    %78 = arith.divf %76, %77 : vector<8x1xf32>
    %79 = vector.broadcast %78 : vector<8x1xf32> to vector<8x32xf32>
    %80 = arith.subf %74, %79 : vector<8x32xf32>
    %81 = arith.mulf %80, %80 : vector<8x32xf32>
    %cst_44 = arith.constant dense<0.000000e+00> : vector<8xf32>
    %82 = vector.multi_reduction <add>, %81, %cst_44 [1] : vector<8x32xf32> to vector<8xf32>
    %83 = vector.shape_cast %82 : vector<8xf32> to vector<8x1xf32>
    %cst_45 = arith.constant 3.200000e+01 : f32
    %84 = vector.broadcast %cst_45 : f32 to vector<8x1xf32>
    %85 = arith.divf %83, %84 : vector<8x1xf32>
    %cst_46 = arith.constant 9.99999974E-6 : f32
    %86 = vector.broadcast %cst_46 : f32 to vector<8x1xf32>
    %87 = arith.addf %85, %86 : vector<8x1xf32>
    %88 = math.rsqrt %87 : vector<8x1xf32>
    %89 = vector.broadcast %88 : vector<8x1xf32> to vector<8x32xf32>
    %90 = arith.mulf %80, %89 : vector<8x32xf32>
    %c0_47 = arith.constant 0 : index
    %c0_48 = arith.constant 0 : index
    %c0_49 = arith.constant 0 : index
    %91 = vector.load %arg6[%c0_47, %c0_48, %c0_49] : memref<1x8x32xf32, #tpu.memory_space<vmem>>, vector<1x8x32xf32>
    %92 = vector.shape_cast %91 : vector<1x8x32xf32> to vector<8x32xf32>
    %93 = vector.shape_cast %90 : vector<8x32xf32> to vector<1x8x32xf32>
    tpu.vector_store %arg6[%c0_47, %c0_48, %c0_49], %93 {strides = array<i32>} : memref<1x8x32xf32, #tpu.memory_space<vmem>>, vector<1x8x32xf32>,
    return
  }
  func.func @transform_0(%arg0: i32) -> (i32, i32, i32) {
    %c0_i32 = arith.constant 0 : i32
    %c0_i32_0 = arith.constant 0 : i32
    %c0_i32_1 = arith.constant 0 : i32
    return %arg0, %c0_i32, %c0_i32_0 : i32, i32, i32
  }
  func.func @transform_1(%arg0: i32) -> (i32, i32) {
    %c0_i32 = arith.constant 0 : i32
    %c0_i32_0 = arith.constant 0 : i32
    %c0_i32_1 = arith.constant 0 : i32
    return %c0_i32, %c0_i32_0 : i32, i32
  }
  func.func @transform_2(%arg0: i32) -> (i32, i32) {
    %c0_i32 = arith.constant 0 : i32
    %c0_i32_0 = arith.constant 0 : i32
    %c0_i32_1 = arith.constant 0 : i32
    return %c0_i32, %c0_i32_0 : i32, i32
  }
  func.func @transform_3(%arg0: i32) -> (i32, i32) {
    %c0_i32 = arith.constant 0 : i32
    %c0_i32_0 = arith.constant 0 : i32
    %c0_i32_1 = arith.constant 0 : i32
    return %c0_i32, %c0_i32_0 : i32, i32
  }
  func.func @transform_4(%arg0: i32) -> (i32, i32) {
    %c0_i32 = arith.constant 0 : i32
    %c0_i32_0 = arith.constant 0 : i32
    %c0_i32_1 = arith.constant 0 : i32
    return %c0_i32, %c0_i32_0 : i32, i32
  }
  func.func @transform_5(%arg0: i32) -> (i32, i32, i32) {
    %c0_i32 = arith.constant 0 : i32
    %c0_i32_0 = arith.constant 0 : i32
    %c0_i32_1 = arith.constant 0 : i32
    return %arg0, %c0_i32, %c0_i32_0 : i32, i32, i32
  }
}

</mosaic_0001>

<llo_original>
// kernel: tpu_custom_call.1
$region0: #{tpu_custom_call.1}
  #allocation0 [shape = 'u32[]', space=smem, size = 0x4, offset = 0x4, fixed_abs, tag = 'smem constant byte address 0x4 - core index']
  #allocation1 [shape = 'u32[144,128]{1,0:T(1,128)}', space=vmem, size = 0x12000, scoped, tag = 'internal scratch']
  #allocation2 [shape = 'f32[4,8,24]{2,1,0:T(8,128)}', space=vmem, size = 0x4000, scoped, tag = 'scratch operand']
  #allocation3 [shape = 'f32[8,32]{1,0:T(8,128)}', space=vmem, size = 0x1000, scoped, tag = 'scratch operand']
  %s0 = inlined_call_operand.hbm [shape: f32[2,8,32], index: 0, kind: input, shape index: {}]
  %s1 = inlined_call_operand.vmem [shape: f32[32,96], index: 1, kind: input, shape index: {}]
  %s2 = inlined_call_operand.vmem [shape: f32[32,32], index: 2, kind: input, shape index: {}]
  %s3 = inlined_call_operand.vmem [shape: f32[32,64], index: 3, kind: input, shape index: {}]
  %s4 = inlined_call_operand.vmem [shape: f32[64,32], index: 4, kind: input, shape index: {}]
  %s5 = inlined_call_operand.hbm [shape: f32[2,8,32], index: 5, kind: output, shape index: {}]
  %s6 = sld [smem:[#allocation0]]
  $region57: #{tpu_custom_call.1} parent=0
    _
  %s8 = ssub.s32 1, %s6
  %s9 = scalar_select 0, %s8, %s6
  $region1: #{tpu_custom_call.1} parent=0
    #allocation4 [shape = 'u8[8192]{0}', space=vmem, size = 0x2000, scoped, tag = 'input window, operand 0']
    #allocation5 [shape = 's32[2]{0}', space=sflag, size = 0x8, scoped, tag = 'scoped memory for tpu_custom_call.1']
    #allocation6 [shape = 's32[2]{0}', space=sflag, size = 0x8, scoped, tag = 'scoped memory for tpu_custom_call.1']
    #allocation7 [shape = 'u8[8192]{0}', space=vmem, size = 0x2000, scoped, tag = 'output window, operand 0']
    %10 = vsyncpa [#allocation5], 0
    %s11 = scalar_lea.sflag [#allocation5], 1
    %12 = vsyncpa %s11, 0
    %13 = vsyncpa [#allocation6], 0
    %s14 = scalar_lea.sflag [#allocation6], 1
    %15 = vsyncpa %s14, 0
    loop: start=0, step=1, limit=4
    $region2: #{tpu_custom_call.1} parent=1 // loop_pre_header
      _
    $region3: #{tpu_custom_call.1} parent=1 // loop_header
      %s17 = sphi 0, %s21
      %p18 = scmp.ge.s32.totalorder %s17, 4
      %s27 = sphi 0, %s29
      %s30 = sphi 0, %s27
      %s31 = sphi 0, %s30
      %s47 = sphi 0, %s31
      %s51 = sphi 0, %s51
      %s53 = sphi 0, %s51
      %s54 = sphi 0, %s53
      %s68 = sphi 0, %s54
      %s72 = sphi 0, %s72
      %s74 = sphi 0, %s72
      %s75 = sphi 0, %s74
      %s89 = sphi 0, %s75
      %s93 = sphi 0, %s93
      %s95 = sphi 0, %s93
      %s96 = sphi 0, %s95
      %s110 = sphi 0, %s96
      %s114 = sphi 0, %s114
      %s116 = sphi 0, %s114
      %s117 = sphi 0, %s116
      %s131 = sphi 0, %s117
      %s137 = sphi 0, %s139
      %s140 = sphi 0, %s137
      %s141 = sphi 0, %s140
      %s157 = sphi 0, %s141
    $region4: #{tpu_custom_call.1} parent=1 // loop_header_branch
      %20 = sbr.rel (%p18) target = $region8
    $region5: #{tpu_custom_call.1} parent=1 // loop_body
      %s22 = ssub.s32 %s17, 1
      %s23 = ssub.s32 %s17, 2
      %s24 = sadd.s32 %s17, 1
      %s25 = ssub.s32 %s17, %s24
      %p26 = scmp.eq.s32.totalorder %s25, 0
      %s28 = sadd.s32 %s27, 1
      %s29 = scalar_select %p26, %s27, %s28
      %p32 = pneg %p26
      %p33 = scmp.eq.s32.totalorder %s17, 1
      %p34 = por %p32, %p33
      %p35 = scmp.ne.s32.totalorder %s27, %s30
      %p36 = scmp.eq.s32.totalorder %s17, 0
      %p37 = por %p35, %p36
      %p38 = scmp.ne.s32.totalorder %s27, %s30
      %p39 = scmp.eq.s32.totalorder %s22, 1
      %p40 = por %p38, %p39
      %p41 = scmp.ne.s32.totalorder %s30, %s31
      %p42 = scmp.eq.s32.totalorder %s22, 0
      %p43 = por %p41, %p42
      %p44 = scmp.ne.s32.totalorder %s30, %s31
      %p45 = scmp.eq.s32.totalorder %s23, 1
      %p46 = por %p44, %p45
      %p48 = scmp.ne.s32.totalorder %s31, %s47
      %p49 = scmp.eq.s32.totalorder %s23, 0
      %p50 = por %p48, %p49
      %s52 = sadd.s32 %s51, 1
      %p55 = scmp.eq.s32.totalorder %s17, 1
      %p56 = scmp.ne.s32.totalorder %s51, %s53
      %p57 = scmp.eq.s32.totalorder %s17, 0
      %p58 = por %p56, %p57
      %p59 = scmp.ne.s32.totalorder %s51, %s53
      %p60 = scmp.eq.s32.totalorder %s22, 1
      %p61 = por %p59, %p60
      %p62 = scmp.ne.s32.totalorder %s53, %s54
      %p63 = scmp.eq.s32.totalorder %s22, 0
      %p64 = por %p62, %p63
      %p65 = scmp.ne.s32.totalorder %s53, %s54
      %p66 = scmp.eq.s32.totalorder %s23, 1
      %p67 = por %p65, %p66
      %p69 = scmp.ne.s32.totalorder %s54, %s68
      %p70 = scmp.eq.s32.totalorder %s23, 0
      %p71 = por %p69, %p70
      %s73 = sadd.s32 %s72, 1
      %p76 = scmp.eq.s32.totalorder %s17, 1
      %p77 = scmp.ne.s32.totalorder %s72, %s74
      %p78 = scmp.eq.s32.totalorder %s17, 0
      %p79 = por %p77, %p78
      %p80 = scmp.ne.s32.totalorder %s72, %s74
      %p81 = scmp.eq.s32.totalorder %s22, 1
      %p82 = por %p80, %p81
      %p83 = scmp.ne.s32.totalorder %s74, %s75
      %p84 = scmp.eq.s32.totalorder %s22, 0
      %p85 = por %p83, %p84
      %p86 = scmp.ne.s32.totalorder %s74, %s75
      %p87 = scmp.eq.s32.totalorder %s23, 1
      %p88 = por %p86, %p87
      %p90 = scmp.ne.s32.totalorder %s75, %s89
      %p91 = scmp.eq.s32.totalorder %s23, 0
      %p92 = por %p90, %p91
      %s94 = sadd.s32 %s93, 1
      %p97 = scmp.eq.s32.totalorder %s17, 1
      %p98 = scmp.ne.s32.totalorder %s93, %s95
      %p99 = scmp.eq.s32.totalorder %s17, 0
      %p100 = por %p98, %p99
      %p101 = scmp.ne.s32.totalorder %s93, %s95
      %p102 = scmp.eq.s32.totalorder %s22, 1
      %p103 = por %p101, %p102
      %p104 = scmp.ne.s32.totalorder %s95, %s96
      %p105 = scmp.eq.s32.totalorder %s22, 0
      %p106 = por %p104, %p105
      %p107 = scmp.ne.s32.totalorder %s95, %s96
      %p108 = scmp.eq.s32.totalorder %s23, 1
      %p109 = por %p107, %p108
      %p111 = scmp.ne.s32.totalorder %s96, %s110
      %p112 = scmp.eq.s32.totalorder %s23, 0
      %p113 = por %p111, %p112
      %s115 = sadd.s32 %s114, 1
      %p118 = scmp.eq.s32.totalorder %s17, 1
      %p119 = scmp.ne.s32.totalorder %s114, %s116
      %p120 = scmp.eq.s32.totalorder %s17, 0
      %p121 = por %p119, %p120
      %p122 = scmp.ne.s32.totalorder %s114, %s116
      %p123 = scmp.eq.s32.totalorder %s22, 1
      %p124 = por %p122, %p123
      %p125 = scmp.ne.s32.totalorder %s116, %s117
      %p126 = scmp.eq.s32.totalorder %s22, 0
      %p127 = por %p125, %p126
      %p128 = scmp.ne.s32.totalorder %s116, %s117
      %p129 = scmp.eq.s32.totalorder %s23, 1
      %p130 = por %p128, %p129
      %p132 = scmp.ne.s32.totalorder %s117, %s131
      %p133 = scmp.eq.s32.totalorder %s23, 0
      %p134 = por %p132, %p133
      %s135 = ssub.s32 %s17, %s24
      %p136 = scmp.eq.s32.totalorder %s135, 0
      %s138 = sadd.s32 %s137, 1
      %s139 = scalar_select %p136, %s137, %s138
      %p142 = pneg %p136
      %p143 = scmp.eq.s32.totalorder %s17, 1
      %p144 = por %p142, %p143
      %p145 = scmp.ne.s32.totalorder %s137, %s140
      %p146 = scmp.eq.s32.totalorder %s17, 0
      %p147 = por %p145, %p146
      %p148 = scmp.ne.s32.totalorder %s137, %s140
      %p149 = scmp.eq.s32.totalorder %s22, 1
      %p150 = por %p148, %p149
      %p151 = scmp.ne.s32.totalorder %s140, %s141
      %p152 = scmp.eq.s32.totalorder %s22, 0
      %p153 = por %p151, %p152
      %p154 = scmp.ne.s32.totalorder %s140, %s141
      %p155 = scmp.eq.s32.totalorder %s23, 1
      %p156 = por %p154, %p155
      %p158 = scmp.ne.s32.totalorder %s141, %s157
      %p159 = scmp.eq.s32.totalorder %s23, 0
      %p160 = por %p158, %p159
      %p161 = scmp.le.s32.totalorder 1, %s17
      %p162 = scmp.lt.s32.totalorder %s17, 3
      %p163 = pnand %p161, %p162
      %p164 = pneg %p163
      // Predicated region
      $region9: #{tpu_custom_call.1} parent=5 // pred_check
        _
      $region10: #{tpu_custom_call.1} parent=5 // pred_check_branch
        %166 = sbr.rel (%p163) target = $region12
      $region11: #{tpu_custom_call.1} parent=5 // pred_region
        %s167 = ssub.s32 %s17, 1
        // Predicated region
        $region13: #{tpu_custom_call.1} parent=11 // pred_check
          %p168 = pneg %p64
        $region14: #{tpu_custom_call.1} parent=11 // pred_check_branch
          %170 = sbr.rel (%p168) target = $region16
        $region15: #{tpu_custom_call.1} parent=11 // pred_region
          _
        $region16: #{tpu_custom_call.1} parent=11 // pred_fallthru
          _
        // Predicated region
        $region17: #{tpu_custom_call.1} parent=11 // pred_check
          %p171 = pneg %p85
        $region18: #{tpu_custom_call.1} parent=11 // pred_check_branch
          %173 = sbr.rel (%p171) target = $region20
        $region19: #{tpu_custom_call.1} parent=11 // pred_region
          _
        $region20: #{tpu_custom_call.1} parent=11 // pred_fallthru
          _
        // Predicated region
        $region21: #{tpu_custom_call.1} parent=11 // pred_check
          %p174 = pneg %p106
        $region22: #{tpu_custom_call.1} parent=11 // pred_check_branch
          %176 = sbr.rel (%p174) target = $region24
        $region23: #{tpu_custom_call.1} parent=11 // pred_region
          _
        $region24: #{tpu_custom_call.1} parent=11 // pred_fallthru
          _
        // Predicated region
        $region25: #{tpu_custom_call.1} parent=11 // pred_check
          %p177 = pneg %p127
        $region26: #{tpu_custom_call.1} parent=11 // pred_check_branch
          %179 = sbr.rel (%p177) target = $region28
        $region27: #{tpu_custom_call.1} parent=11 // pred_region
          _
        $region28: #{tpu_custom_call.1} parent=11 // pred_fallthru
          _
      $region12: #{tpu_custom_call.1} parent=5 // pred_fallthru
        _
      %p180 = scmp.lt.s32.totalorder %s17, 2
      // Predicated region
      $region29: #{tpu_custom_call.1} parent=5 // pred_check
        %p181 = pneg %p180
      $region30: #{tpu_custom_call.1} parent=5 // pred_check_branch
        %183 = sbr.rel (%p181) target = $region32
      $region31: #{tpu_custom_call.1} parent=5 // pred_region
        // Predicated region
        $region33: #{tpu_custom_call.1} parent=31 // pred_check
          %p184 = pneg %p37
        $region34: #{tpu_custom_call.1} parent=31 // pred_check_branch
          %186 = sbr.rel (%p184) target = $region36
        $region35: #{tpu_custom_call.1} parent=31 // pred_region
          %s187 = sand.u32 %s27, 1
          %s188 = scalar_lea.sflag [#allocation5], %s187
          %s189 = sand.u32 %s27, 1
          %s190 = smul.addr %s189, 8
          %s191 = scalar_lea.vmem [#allocation4], %s190
          %s193 = ssub.s32 128, 128
          %194 = vsyncadd %s188, %s193
          %s195 = smul.addr %s17, 128
          %s196 = scalar_lea.hbm %s0, %s195
          %s198 = sshll.u32 %s191, 4
          %s199 = int_to_ptr.vmem [resolvable:$true] %s198
          %201 = dma.hbm_to_vmem [thread:$0]  %s196, 128, %s199, %s188
        $region36: #{tpu_custom_call.1} parent=31 // pred_fallthru
          _
      $region32: #{tpu_custom_call.1} parent=5 // pred_fallthru
        _
      %p202 = scmp.le.s32.totalorder 1, %s17
      %p203 = scmp.lt.s32.totalorder %s17, 3
      %p204 = pnand %p202, %p203
      %p205 = pneg %p204
      // Predicated region
      $region37: #{tpu_custom_call.1} parent=5 // pred_check
        _
      $region38: #{tpu_custom_call.1} parent=5 // pred_check_branch
        %207 = sbr.rel (%p204) target = $region40
      $region39: #{tpu_custom_call.1} parent=5 // pred_region
        %s208 = ssub.s32 %s17, 1
        %s209 = sand.u32 %s30, 1
        %s210 = scalar_lea.sflag [#allocation5], %s209
        %s211 = sand.u32 %s30, 1
        %s212 = smul.addr %s211, 8
        %s213 = scalar_lea.vmem [#allocation4], %s212
        // Predicated region
        $region41: #{tpu_custom_call.1} parent=39 // pred_check
          %p214 = pneg %p43
        $region42: #{tpu_custom_call.1} parent=39 // pred_check_branch
          %216 = sbr.rel (%p214) target = $region44
        $region43: #{tpu_custom_call.1} parent=39 // pred_region
          %217 = dma.done %s210, 128
        $region44: #{tpu_custom_call.1} parent=39 // pred_fallthru
          _
        %s218 = sand.u32 %s30, 1
        %s219 = scalar_lea.sflag [#allocation5], %s218
        %s220 = sand.u32 %s30, 1
        %s221 = smul.addr %s220, 8
        %s222 = scalar_lea.vmem [#allocation4], %s221
        %p223 = pneg %p43
        %p224 = pneg %p40
        %p225 = pneg %p64
        %p226 = pneg %p61
        %p227 = pneg %p85
        %p228 = pneg %p82
        %p229 = pneg %p106
        %p230 = pneg %p103
        %p231 = pneg %p127
        %p232 = pneg %p124
        %p233 = pneg %p153
        %p234 = pneg %p150
        %s235 = sand.u32 %s140, 1
        %s236 = scalar_lea.sflag [#allocation6], %s235
        %s237 = sand.u32 %s140, 1
        %s238 = smul.addr %s237, 8
        %s239 = scalar_lea.vmem [#allocation7], %s238
        %v240 = vld [vmem:[%s213] sm:$0xff]
        %v241 = vld [vmem:[%s1] sm:$0xff]
        %v242 = vld [vmem:[%s1 + $0x8] sm:$0xff]
        %v243 = vld [vmem:[%s1 + $0x10] sm:$0xff]
        %v244 = vld [vmem:[%s1 + $0x18] sm:$0xff]
        %vm245 = vcmask 261120
        %v247 = vsel %vm245, %v240, 0
        %249 = vmatprep.subr.mxu0 0.0
        %250 = vmatpush1.msra.mxu0 %v241
        %251 = vmatprep.subr.mxu0 0.0
        %252 = vmatpush1.msra.mxu0 %v242
        %253 = vmatprep.subr.mxu0 0.0
        %254 = vmatpush1.msra.mxu0 %v243
        %255 = vmatprep.subr.mxu0 0.0
        %256 = vmatpush1.msra.mxu0 %v244
        %257 = vmatprep.subr.mxu0 0.0
        %258 = vmatpush1.msra.mxu0 0.0
        %259 = vmatprep.subr.mxu0 0.0
        %260 = vmatpush1.msra.mxu0 0.0
        %261 = vmatprep.subr.mxu0 0.0
        %262 = vmatpush1.msra.mxu0 0.0
        %263 = vmatprep.subr.mxu0 0.0
        %264 = vmatpush1.msra.mxu0 0.0
        %265 = vmatprep.subr.mxu0 0.0
        %266 = vmatpush1.msra.mxu0 0.0
        %267 = vmatprep.subr.mxu0 0.0
        %268 = vmatpush1.msra.mxu0 0.0
        %269 = vmatprep.subr.mxu0 0.0
        %270 = vmatpush1.msra.mxu0 0.0
        %271 = vmatprep.subr.mxu0 0.0
        %272 = vmatpush1.msra.mxu0 0.0
        %273 = vmatprep.subr.mxu0 0.0
        %274 = vmatpush1.msra.mxu0 0.0
        %275 = vmatprep.subr.mxu0 0.0
        %276 = vmatpush1.msra.mxu0 0.0
        %277 = vmatprep.subr.mxu0 0.0
        %278 = vmatpush1.msra.mxu0 0.0
        %279 = vmatprep.subr.mxu0 0.0
        %280 = vmatpush1.msra.mxu0 0.0
        %281 = vmatprep.subr.mxu0 0.0
        %282 = vmatpush1.msra.mxu0 0.0
        %283 = vmatprep.subr.mxu0 0.0
        %284 = vmatpush1.msra.mxu0 0.0
        %285 = vmatprep.subr.mxu0 0.0
        %286 = vmatpush1.msra.mxu0 0.0
        %287 = vmatprep.subr.mxu0 0.0
        %288 = vmatpush1.msra.mxu0 0.0
        %289 = vmatprep.subr.mxu0 0.0
        %290 = vmatpush1.msra.mxu0 0.0
        %291 = vmatprep.subr.mxu0 0.0
        %292 = vmatpush1.msra.mxu0 0.0
        %293 = vmatprep.subr.mxu0 0.0
        %294 = vmatpush1.msra.mxu0 0.0
        %295 = vmatprep.subr.mxu0 0.0
        %296 = vmatpush1.msra.mxu0 0.0
        %297 = vmatprep.subr.mxu0 0.0
        %298 = vmatpush1.msra.mxu0 0.0
        %299 = vmatprep.subr.mxu0 0.0
        %300 = vmatpush1.msra.mxu0 0.0
        %301 = vmatprep.subr.mxu0 0.0
        %302 = vmatpush1.msra.mxu0 0.0
        %303 = vmatprep.subr.mxu0 0.0
        %304 = vmatpush1.msra.mxu0 0.0
        %305 = vmatprep.subr.mxu0 0.0
        %306 = vmatpush1.msra.mxu0 0.0
        %307 = vmatprep.subr.mxu0 0.0
        %308 = vmatpush1.msra.mxu0 0.0
        %309 = vmatprep.subr.mxu0 0.0
        %310 = vmatpush1.msra.mxu0 0.0
        %311 = vmatprep.subr.mxu0 0.0
        %312 = vmatpush1.msra.mxu0 0.0
        %313 = vmatprep.mubr.f32.mxu0 0.0
        %314 = vmatmul.mubr.f32.gmra.mrb[0].mxu0 %v247
        %v315 = vpop.f32.mrb[0].mxu0
        %v316 = vadd.f32 0.0, %v315
        %v317 = vpop.f32.mrb[0].mxu0
        %318 = vdwg.mxu0
        %vm319 = vcmask 195584
        %320 = vst.msk [vmem:[#allocation2] sm:$0xff] %vm319, %v316
        %322 = vrot.lane.b32.xlu0 %v316, 104
        %v323 = vpop.permute.xlu0 %322
        %s325 = scalar_lea.vmem [#allocation2], 8
        %326 = vst.msk [vmem:[%s325] sm:$0xff] %vm319, %v323
        %327 = vrot.lane.b32.xlu0 %v316, 80
        %v328 = vpop.permute.xlu0 %327
        %s330 = scalar_lea.vmem [#allocation2], 16
        %331 = vst.msk [vmem:[%s330] sm:$0xff] %vm319, %v328
        %332 = vrot.lane.b32.xlu0 %v316, 56
        %v333 = vpop.permute.xlu0 %332
        %s335 = scalar_lea.vmem [#allocation2], 24
        %336 = vst.msk [vmem:[%s335] sm:$0xff] %vm319, %v333
        %v337 = vld [vmem:[#allocation2] sm:$0xff]
        %v338 = vld [vmem:[#allocation2 + $0x8] sm:$0xff]
        %v339 = vld [vmem:[#allocation2 + $0x10] sm:$0xff]
        %v340 = vld [vmem:[#allocation2 + $0x18] sm:$0xff]
        %342 = vrot.lane.b32.xlu0 %v337, 120
        %v343 = vpop.permute.xlu0 %342
        %vm344 = vcmask 64512
        %v345 = vsel %vm344, %v337, 0
        %v347 = vsel %vm344, %v343, 0
        %349 = vmatprep.subr.mxu0 0.0
        %350 = vmatpush1.xpose.msra.mxu0 %v347
        %351 = vmatprep.subr.mxu0 0.0
        %352 = vmatpush1.xpose.msra.mxu0 0.0
        %353 = vmatprep.subr.mxu0 0.0
        %354 = vmatpush1.xpose.msra.mxu0 0.0
        %355 = vmatprep.subr.mxu0 0.0
        %356 = vmatpush1.xpose.msra.mxu0 0.0
        %357 = vmatprep.subr.mxu0 0.0
        %358 = vmatpush1.xpose.msra.mxu0 0.0
        %359 = vmatprep.subr.mxu0 0.0
        %360 = vmatpush1.xpose.msra.mxu0 0.0
        %361 = vmatprep.subr.mxu0 0.0
        %362 = vmatpush1.xpose.msra.mxu0 0.0
        %363 = vmatprep.subr.mxu0 0.0
        %364 = vmatpush1.xpose.msra.mxu0 0.0
        %365 = vmatprep.subr.mxu0 0.0
        %366 = vmatpush1.xpose.msra.mxu0 0.0
        %367 = vmatprep.subr.mxu0 0.0
        %368 = vmatpush1.xpose.msra.mxu0 0.0
        %369 = vmatprep.subr.mxu0 0.0
        %370 = vmatpush1.xpose.msra.mxu0 0.0
        %371 = vmatprep.subr.mxu0 0.0
        %372 = vmatpush1.xpose.msra.mxu0 0.0
        %373 = vmatprep.subr.mxu0 0.0
        %374 = vmatpush1.xpose.msra.mxu0 0.0
        %375 = vmatprep.subr.mxu0 0.0
        %376 = vmatpush1.xpose.msra.mxu0 0.0
        %377 = vmatprep.subr.mxu0 0.0
        %378 = vmatpush1.xpose.msra.mxu0 0.0
        %379 = vmatprep.subr.mxu0 0.0
        %380 = vmatpush1.xpose.msra.mxu0 0.0
        %381 = vmatprep.subr.mxu0 0.0
        %382 = vmatpush1.xpose.msra.mxu0 0.0
        %383 = vmatprep.subr.mxu0 0.0
        %384 = vmatpush1.xpose.msra.mxu0 0.0
        %385 = vmatprep.subr.mxu0 0.0
        %386 = vmatpush1.xpose.msra.mxu0 0.0
        %387 = vmatprep.subr.mxu0 0.0
        %388 = vmatpush1.xpose.msra.mxu0 0.0
        %389 = vmatprep.subr.mxu0 0.0
        %390 = vmatpush1.xpose.msra.mxu0 0.0
        %391 = vmatprep.subr.mxu0 0.0
        %392 = vmatpush1.xpose.msra.mxu0 0.0
        %393 = vmatprep.subr.mxu0 0.0
        %394 = vmatpush1.xpose.msra.mxu0 0.0
        %395 = vmatprep.subr.mxu0 0.0
        %396 = vmatpush1.xpose.msra.mxu0 0.0
        %397 = vmatprep.subr.mxu0 0.0
        %398 = vmatpush1.xpose.msra.mxu0 0.0
        %399 = vmatprep.subr.mxu0 0.0
        %400 = vmatpush1.xpose.msra.mxu0 0.0
        %401 = vmatprep.subr.mxu0 0.0
        %402 = vmatpush1.xpose.msra.mxu0 0.0
        %403 = vmatprep.subr.mxu0 0.0
        %404 = vmatpush1.xpose.msra.mxu0 0.0
        %405 = vmatprep.subr.mxu0 0.0
        %406 = vmatpush1.xpose.msra.mxu0 0.0
        %407 = vmatprep.subr.mxu0 0.0
        %408 = vmatpush1.xpose.msra.mxu0 0.0
        %409 = vmatprep.subr.mxu0 0.0
        %410 = vmatpush1.xpose.msra.mxu0 0.0
        %411 = vmatprep.subr.mxu0 0.0
        %412 = vmatpush1.xpose.msra.mxu0 0.0
        %413 = vmatprep.mubr.f32.mxu0 0.0
        %414 = vmatmul.mubr.f32.gmra.mrb[0].mxu0 %v345
        %v415 = vpop.f32.mrb[0].mxu0
        %v416 = vadd.f32 0.0, %v415
        %v417 = vpop.f32.mrb[0].mxu0
        %418 = vdwg.mxu0
        %420 = vrot.lane.b32.xlu0 %v338, 120
        %v421 = vpop.permute.xlu0 %420
        %v422 = vsel %vm344, %v338, 0
        %v424 = vsel %vm344, %v421, 0
        %426 = vmatprep.subr.mxu0 0.0
        %427 = vmatpush1.xpose.msra.mxu0 %v424
        %428 = vmatprep.subr.mxu0 0.0
        %429 = vmatpush1.xpose.msra.mxu0 0.0
        %430 = vmatprep.subr.mxu0 0.0
        %431 = vmatpush1.xpose.msra.mxu0 0.0
        %432 = vmatprep.subr.mxu0 0.0
        %433 = vmatpush1.xpose.msra.mxu0 0.0
        %434 = vmatprep.subr.mxu0 0.0
        %435 = vmatpush1.xpose.msra.mxu0 0.0
        %436 = vmatprep.subr.mxu0 0.0
        %437 = vmatpush1.xpose.msra.mxu0 0.0
        %438 = vmatprep.subr.mxu0 0.0
        %439 = vmatpush1.xpose.msra.mxu0 0.0
        %440 = vmatprep.subr.mxu0 0.0
        %441 = vmatpush1.xpose.msra.mxu0 0.0
        %442 = vmatprep.subr.mxu0 0.0
        %443 = vmatpush1.xpose.msra.mxu0 0.0
        %444 = vmatprep.subr.mxu0 0.0
        %445 = vmatpush1.xpose.msra.mxu0 0.0
        %446 = vmatprep.subr.mxu0 0.0
        %447 = vmatpush1.xpose.msra.mxu0 0.0
        %448 = vmatprep.subr.mxu0 0.0
        %449 = vmatpush1.xpose.msra.mxu0 0.0
        %450 = vmatprep.subr.mxu0 0.0
        %451 = vmatpush1.xpose.msra.mxu0 0.0
        %452 = vmatprep.subr.mxu0 0.0
        %453 = vmatpush1.xpose.msra.mxu0 0.0
        %454 = vmatprep.subr.mxu0 0.0
        %455 = vmatpush1.xpose.msra.mxu0 0.0
        %456 = vmatprep.subr.mxu0 0.0
        %457 = vmatpush1.xpose.msra.mxu0 0.0
        %458 = vmatprep.subr.mxu0 0.0
        %459 = vmatpush1.xpose.msra.mxu0 0.0
        %460 = vmatprep.subr.mxu0 0.0
        %461 = vmatpush1.xpose.msra.mxu0 0.0
        %462 = vmatprep.subr.mxu0 0.0
        %463 = vmatpush1.xpose.msra.mxu0 0.0
        %464 = vmatprep.subr.mxu0 0.0
        %465 = vmatpush1.xpose.msra.mxu0 0.0
        %466 = vmatprep.subr.mxu0 0.0
        %467 = vmatpush1.xpose.msra.mxu0 0.0
        %468 = vmatprep.subr.mxu0 0.0
        %469 = vmatpush1.xpose.msra.mxu0 0.0
        %470 = vmatprep.subr.mxu0 0.0
        %471 = vmatpush1.xpose.msra.mxu0 0.0
        %472 = vmatprep.subr.mxu0 0.0
        %473 = vmatpush1.xpose.msra.mxu0 0.0
        %474 = vmatprep.subr.mxu0 0.0
        %475 = vmatpush1.xpose.msra.mxu0 0.0
        %476 = vmatprep.subr.mxu0 0.0
        %477 = vmatpush1.xpose.msra.mxu0 0.0
        %478 = vmatprep.subr.mxu0 0.0
        %479 = vmatpush1.xpose.msra.mxu0 0.0
        %480 = vmatprep.subr.mxu0 0.0
        %481 = vmatpush1.xpose.msra.mxu0 0.0
        %482 = vmatprep.subr.mxu0 0.0
        %483 = vmatpush1.xpose.msra.mxu0 0.0
        %484 = vmatprep.subr.mxu0 0.0
        %485 = vmatpush1.xpose.msra.mxu0 0.0
        %486 = vmatprep.subr.mxu0 0.0
        %487 = vmatpush1.xpose.msra.mxu0 0.0
        %488 = vmatprep.subr.mxu0 0.0
        %489 = vmatpush1.xpose.msra.mxu0 0.0
        %490 = vmatprep.mubr.f32.mxu0 0.0
        %491 = vmatmul.mubr.f32.gmra.mrb[0].mxu0 %v422
        %v492 = vpop.f32.mrb[0].mxu0
        %v493 = vadd.f32 0.0, %v492
        %v494 = vpop.f32.mrb[0].mxu0
        %495 = vdwg.mxu0
        %497 = vrot.lane.b32.xlu0 %v339, 120
        %v498 = vpop.permute.xlu0 %497
        %v499 = vsel %vm344, %v339, 0
        %v501 = vsel %vm344, %v498, 0
        %503 = vmatprep.subr.mxu0 0.0
        %504 = vmatpush1.xpose.msra.mxu0 %v501
        %505 = vmatprep.subr.mxu0 0.0
        %506 = vmatpush1.xpose.msra.mxu0 0.0
        %507 = vmatprep.subr.mxu0 0.0
        %508 = vmatpush1.xpose.msra.mxu0 0.0
        %509 = vmatprep.subr.mxu0 0.0
        %510 = vmatpush1.xpose.msra.mxu0 0.0
        %511 = vmatprep.subr.mxu0 0.0
        %512 = vmatpush1.xpose.msra.mxu0 0.0
        %513 = vmatprep.subr.mxu0 0.0
        %514 = vmatpush1.xpose.msra.mxu0 0.0
        %515 = vmatprep.subr.mxu0 0.0
        %516 = vmatpush1.xpose.msra.mxu0 0.0
        %517 = vmatprep.subr.mxu0 0.0
        %518 = vmatpush1.xpose.msra.mxu0 0.0
        %519 = vmatprep.subr.mxu0 0.0
        %520 = vmatpush1.xpose.msra.mxu0 0.0
        %521 = vmatprep.subr.mxu0 0.0
        %522 = vmatpush1.xpose.msra.mxu0 0.0
        %523 = vmatprep.subr.mxu0 0.0
        %524 = vmatpush1.xpose.msra.mxu0 0.0
        %525 = vmatprep.subr.mxu0 0.0
        %526 = vmatpush1.xpose.msra.mxu0 0.0
        %527 = vmatprep.subr.mxu0 0.0
        %528 = vmatpush1.xpose.msra.mxu0 0.0
        %529 = vmatprep.subr.mxu0 0.0
        %530 = vmatpush1.xpose.msra.mxu0 0.0
        %531 = vmatprep.subr.mxu0 0.0
        %532 = vmatpush1.xpose.msra.mxu0 0.0
        %533 = vmatprep.subr.mxu0 0.0
        %534 = vmatpush1.xpose.msra.mxu0 0.0
        %535 = vmatprep.subr.mxu0 0.0
        %536 = vmatpush1.xpose.msra.mxu0 0.0
        %537 = vmatprep.subr.mxu0 0.0
        %538 = vmatpush1.xpose.msra.mxu0 0.0
        %539 = vmatprep.subr.mxu0 0.0
        %540 = vmatpush1.xpose.msra.mxu0 0.0
        %541 = vmatprep.subr.mxu0 0.0
        %542 = vmatpush1.xpose.msra.mxu0 0.0
        %543 = vmatprep.subr.mxu0 0.0
        %544 = vmatpush1.xpose.msra.mxu0 0.0
        %545 = vmatprep.subr.mxu0 0.0
        %546 = vmatpush1.xpose.msra.mxu0 0.0
        %547 = vmatprep.subr.mxu0 0.0
        %548 = vmatpush1.xpose.msra.mxu0 0.0
        %549 = vmatprep.subr.mxu0 0.0
        %550 = vmatpush1.xpose.msra.mxu0 0.0
        %551 = vmatprep.subr.mxu0 0.0
        %552 = vmatpush1.xpose.msra.mxu0 0.0
        %553 = vmatprep.subr.mxu0 0.0
        %554 = vmatpush1.xpose.msra.mxu0 0.0
        %555 = vmatprep.subr.mxu0 0.0
        %556 = vmatpush1.xpose.msra.mxu0 0.0
        %557 = vmatprep.subr.mxu0 0.0
        %558 = vmatpush1.xpose.msra.mxu0 0.0
        %559 = vmatprep.subr.mxu0 0.0
        %560 = vmatpush1.xpose.msra.mxu0 0.0
        %561 = vmatprep.subr.mxu0 0.0
        %562 = vmatpush1.xpose.msra.mxu0 0.0
        %563 = vmatprep.subr.mxu0 0.0
        %564 = vmatpush1.xpose.msra.mxu0 0.0
        %565 = vmatprep.subr.mxu0 0.0
        %566 = vmatpush1.xpose.msra.mxu0 0.0
        %567 = vmatprep.mubr.f32.mxu0 0.0
        %568 = vmatmul.mubr.f32.gmra.mrb[0].mxu0 %v499
        %v569 = vpop.f32.mrb[0].mxu0
        %v570 = vadd.f32 0.0, %v569
        %v571 = vpop.f32.mrb[0].mxu0
        %572 = vdwg.mxu0
        %574 = vrot.lane.b32.xlu0 %v340, 120
        %v575 = vpop.permute.xlu0 %574
        %v576 = vsel %vm344, %v340, 0
        %v578 = vsel %vm344, %v575, 0
        %580 = vmatprep.subr.mxu0 0.0
        %581 = vmatpush1.xpose.msra.mxu0 %v578
        %582 = vmatprep.subr.mxu0 0.0
        %583 = vmatpush1.xpose.msra.mxu0 0.0
        %584 = vmatprep.subr.mxu0 0.0
        %585 = vmatpush1.xpose.msra.mxu0 0.0
        %586 = vmatprep.subr.mxu0 0.0
        %587 = vmatpush1.xpose.msra.mxu0 0.0
        %588 = vmatprep.subr.mxu0 0.0
        %589 = vmatpush1.xpose.msra.mxu0 0.0
        %590 = vmatprep.subr.mxu0 0.0
        %591 = vmatpush1.xpose.msra.mxu0 0.0
        %592 = vmatprep.subr.mxu0 0.0
        %593 = vmatpush1.xpose.msra.mxu0 0.0
        %594 = vmatprep.subr.mxu0 0.0
        %595 = vmatpush1.xpose.msra.mxu0 0.0
        %596 = vmatprep.subr.mxu0 0.0
        %597 = vmatpush1.xpose.msra.mxu0 0.0
        %598 = vmatprep.subr.mxu0 0.0
        %599 = vmatpush1.xpose.msra.mxu0 0.0
        %600 = vmatprep.subr.mxu0 0.0
        %601 = vmatpush1.xpose.msra.mxu0 0.0
        %602 = vmatprep.subr.mxu0 0.0
        %603 = vmatpush1.xpose.msra.mxu0 0.0
        %604 = vmatprep.subr.mxu0 0.0
        %605 = vmatpush1.xpose.msra.mxu0 0.0
        %606 = vmatprep.subr.mxu0 0.0
        %607 = vmatpush1.xpose.msra.mxu0 0.0
        %608 = vmatprep.subr.mxu0 0.0
        %609 = vmatpush1.xpose.msra.mxu0 0.0
        %610 = vmatprep.subr.mxu0 0.0
        %611 = vmatpush1.xpose.msra.mxu0 0.0
        %612 = vmatprep.subr.mxu0 0.0
        %613 = vmatpush1.xpose.msra.mxu0 0.0
        %614 = vmatprep.subr.mxu0 0.0
        %615 = vmatpush1.xpose.msra.mxu0 0.0
        %616 = vmatprep.subr.mxu0 0.0
        %617 = vmatpush1.xpose.msra.mxu0 0.0
        %618 = vmatprep.subr.mxu0 0.0
        %619 = vmatpush1.xpose.msra.mxu0 0.0
        %620 = vmatprep.subr.mxu0 0.0
        %621 = vmatpush1.xpose.msra.mxu0 0.0
        %622 = vmatprep.subr.mxu0 0.0
        %623 = vmatpush1.xpose.msra.mxu0 0.0
        %624 = vmatprep.subr.mxu0 0.0
        %625 = vmatpush1.xpose.msra.mxu0 0.0
        %626 = vmatprep.subr.mxu0 0.0
        %627 = vmatpush1.xpose.msra.mxu0 0.0
        %628 = vmatprep.subr.mxu0 0.0
        %629 = vmatpush1.xpose.msra.mxu0 0.0
        %630 = vmatprep.subr.mxu0 0.0
        %631 = vmatpush1.xpose.msra.mxu0 0.0
        %632 = vmatprep.subr.mxu0 0.0
        %633 = vmatpush1.xpose.msra.mxu0 0.0
        %634 = vmatprep.subr.mxu0 0.0
        %635 = vmatpush1.xpose.msra.mxu0 0.0
        %636 = vmatprep.subr.mxu0 0.0
        %637 = vmatpush1.xpose.msra.mxu0 0.0
        %638 = vmatprep.subr.mxu0 0.0
        %639 = vmatpush1.xpose.msra.mxu0 0.0
        %640 = vmatprep.subr.mxu0 0.0
        %641 = vmatpush1.xpose.msra.mxu0 0.0
        %642 = vmatprep.subr.mxu0 0.0
        %643 = vmatpush1.xpose.msra.mxu0 0.0
        %644 = vmatprep.mubr.f32.mxu0 0.0
        %645 = vmatmul.mubr.f32.gmra.mrb[0].mxu0 %v576
        %v646 = vpop.f32.mrb[0].mxu0
        %v647 = vadd.f32 0.0, %v646
        %v648 = vpop.f32.mrb[0].mxu0
        %649 = vdwg.mxu0
        %v650 = vsel %vm344, %v416, -inf
        %651 = vmax.xlane.f32.xlu0 %v650
        %v652 = vpop.xlane.xlu0 %651
        %v653 = vsel %vm344, %v493, -inf
        %654 = vmax.xlane.f32.xlu0 %v653
        %v655 = vpop.xlane.xlu0 %654
        %v656 = vsel %vm344, %v570, -inf
        %657 = vmax.xlane.f32.xlu0 %v656
        %v658 = vpop.xlane.xlu0 %657
        %v659 = vsel %vm344, %v647, -inf
        %660 = vmax.xlane.f32.xlu0 %v659
        %v661 = vpop.xlane.xlu0 %660
        %v662 = vsub.f32 %v416, %v652
        %v663 = vsub.f32 %v493, %v655
        %v664 = vsub.f32 %v570, %v658
        %v665 = vsub.f32 %v647, %v661
        %v666 = vmul.f32 %v662, 1.442695
        %v667 = vpow.pop %v666
        %v668 = vmul.f32 %v663, 1.442695
        %v669 = vpow.pop %v668
        %v670 = vmul.f32 %v664, 1.442695
        %v671 = vpow.pop %v670
        %v672 = vmul.f32 %v665, 1.442695
        %v673 = vpow.pop %v672
        %v674 = vsel %vm344, %v667, 0.0
        %675 = vadd.xlane.f32.xlu0 %v674
        %v676 = vpop.xlane.xlu0 %675
        %v677 = vsel %vm344, %v669, 0.0
        %678 = vadd.xlane.f32.xlu0 %v677
        %v679 = vpop.xlane.xlu0 %678
        %v680 = vsel %vm344, %v671, 0.0
        %681 = vadd.xlane.f32.xlu0 %v680
        %v682 = vpop.xlane.xlu0 %681
        %v683 = vsel %vm344, %v673, 0.0
        %684 = vadd.xlane.f32.xlu0 %v683
        %v685 = vpop.xlane.xlu0 %684
        %v686 = vrcp.pop %v676
        %v687 = vrcp.pop %v679
        %v688 = vrcp.pop %v682
        %v689 = vrcp.pop %v685
        %v690 = vmul.f32 %v667, %v686
        %v691 = vmul.f32 %v669, %v687
        %v692 = vmul.f32 %v671, %v688
        %v693 = vmul.f32 %v673, %v689
        %694 = vrot.lane.b32.xlu0 %v337, 112
        %v695 = vpop.permute.xlu0 %694
        %v698 = vsel %vm344, %v690, 0
        %700 = vmatprep.subr.mxu0 0.0
        %701 = vmatpush1.msra.mxu0 %v695
        %702 = vmatprep.subr.mxu0 0.0
        %703 = vmatpush1.msra.mxu0 0.0
        %704 = vmatprep.subr.mxu0 0.0
        %705 = vmatpush1.msra.mxu0 0.0
        %706 = vmatprep.subr.mxu0 0.0
        %707 = vmatpush1.msra.mxu0 0.0
        %708 = vmatprep.subr.mxu0 0.0
        %709 = vmatpush1.msra.mxu0 0.0
        %710 = vmatprep.subr.mxu0 0.0
        %711 = vmatpush1.msra.mxu0 0.0
        %712 = vmatprep.subr.mxu0 0.0
        %713 = vmatpush1.msra.mxu0 0.0
        %714 = vmatprep.subr.mxu0 0.0
        %715 = vmatpush1.msra.mxu0 0.0
        %716 = vmatprep.subr.mxu0 0.0
        %717 = vmatpush1.msra.mxu0 0.0
        %718 = vmatprep.subr.mxu0 0.0
        %719 = vmatpush1.msra.mxu0 0.0
        %720 = vmatprep.subr.mxu0 0.0
        %721 = vmatpush1.msra.mxu0 0.0
        %722 = vmatprep.subr.mxu0 0.0
        %723 = vmatpush1.msra.mxu0 0.0
        %724 = vmatprep.subr.mxu0 0.0
        %725 = vmatpush1.msra.mxu0 0.0
        %726 = vmatprep.subr.mxu0 0.0
        %727 = vmatpush1.msra.mxu0 0.0
        %728 = vmatprep.subr.mxu0 0.0
        %729 = vmatpush1.msra.mxu0 0.0
        %730 = vmatprep.subr.mxu0 0.0
        %731 = vmatpush1.msra.mxu0 0.0
        %732 = vmatprep.subr.mxu0 0.0
        %733 = vmatpush1.msra.mxu0 0.0
        %734 = vmatprep.subr.mxu0 0.0
        %735 = vmatpush1.msra.mxu0 0.0
        %736 = vmatprep.subr.mxu0 0.0
        %737 = vmatpush1.msra.mxu0 0.0
        %738 = vmatprep.subr.mxu0 0.0
        %739 = vmatpush1.msra.mxu0 0.0
        %740 = vmatprep.subr.mxu0 0.0
        %741 = vmatpush1.msra.mxu0 0.0
        %742 = vmatprep.subr.mxu0 0.0
        %743 = vmatpush1.msra.mxu0 0.0
        %744 = vmatprep.subr.mxu0 0.0
        %745 = vmatpush1.msra.mxu0 0.0
        %746 = vmatprep.subr.mxu0 0.0
        %747 = vmatpush1.msra.mxu0 0.0
        %748 = vmatprep.subr.mxu0 0.0
        %749 = vmatpush1.msra.mxu0 0.0
        %750 = vmatprep.subr.mxu0 0.0
        %751 = vmatpush1.msra.mxu0 0.0
        %752 = vmatprep.subr.mxu0 0.0
        %753 = vmatpush1.msra.mxu0 0.0
        %754 = vmatprep.subr.mxu0 0.0
        %755 = vmatpush1.msra.mxu0 0.0
        %756 = vmatprep.subr.mxu0 0.0
        %757 = vmatpush1.msra.mxu0 0.0
        %758 = vmatprep.subr.mxu0 0.0
        %759 = vmatpush1.msra.mxu0 0.0
        %760 = vmatprep.subr.mxu0 0.0
        %761 = vmatpush1.msra.mxu0 0.0
        %762 = vmatprep.subr.mxu0 0.0
        %763 = vmatpush1.msra.mxu0 0.0
        %764 = vmatprep.mubr.f32.mxu0 0.0
        %765 = vmatmul.mubr.f32.gmra.mrb[0].mxu0 %v698
        %v766 = vpop.f32.mrb[0].mxu0
        %v767 = vadd.f32 0.0, %v766
        %v768 = vpop.f32.mrb[0].mxu0
        %769 = vdwg.mxu0
        %770 = vrot.lane.b32.xlu0 %v338, 112
        %v771 = vpop.permute.xlu0 %770
        %v774 = vsel %vm344, %v691, 0
        %776 = vmatprep.subr.mxu0 0.0
        %777 = vmatpush1.msra.mxu0 %v771
        %778 = vmatprep.subr.mxu0 0.0
        %779 = vmatpush1.msra.mxu0 0.0
        %780 = vmatprep.subr.mxu0 0.0
        %781 = vmatpush1.msra.mxu0 0.0
        %782 = vmatprep.subr.mxu0 0.0
        %783 = vmatpush1.msra.mxu0 0.0
        %784 = vmatprep.subr.mxu0 0.0
        %785 = vmatpush1.msra.mxu0 0.0
        %786 = vmatprep.subr.mxu0 0.0
        %787 = vmatpush1.msra.mxu0 0.0
        %788 = vmatprep.subr.mxu0 0.0
        %789 = vmatpush1.msra.mxu0 0.0
        %790 = vmatprep.subr.mxu0 0.0
        %791 = vmatpush1.msra.mxu0 0.0
        %792 = vmatprep.subr.mxu0 0.0
        %793 = vmatpush1.msra.mxu0 0.0
        %794 = vmatprep.subr.mxu0 0.0
        %795 = vmatpush1.msra.mxu0 0.0
        %796 = vmatprep.subr.mxu0 0.0
        %797 = vmatpush1.msra.mxu0 0.0
        %798 = vmatprep.subr.mxu0 0.0
        %799 = vmatpush1.msra.mxu0 0.0
        %800 = vmatprep.subr.mxu0 0.0
        %801 = vmatpush1.msra.mxu0 0.0
        %802 = vmatprep.subr.mxu0 0.0
        %803 = vmatpush1.msra.mxu0 0.0
        %804 = vmatprep.subr.mxu0 0.0
        %805 = vmatpush1.msra.mxu0 0.0
        %806 = vmatprep.subr.mxu0 0.0
        %807 = vmatpush1.msra.mxu0 0.0
        %808 = vmatprep.subr.mxu0 0.0
        %809 = vmatpush1.msra.mxu0 0.0
        %810 = vmatprep.subr.mxu0 0.0
        %811 = vmatpush1.msra.mxu0 0.0
        %812 = vmatprep.subr.mxu0 0.0
        %813 = vmatpush1.msra.mxu0 0.0
        %814 = vmatprep.subr.mxu0 0.0
        %815 = vmatpush1.msra.mxu0 0.0
        %816 = vmatprep.subr.mxu0 0.0
        %817 = vmatpush1.msra.mxu0 0.0
        %818 = vmatprep.subr.mxu0 0.0
        %819 = vmatpush1.msra.mxu0 0.0
        %820 = vmatprep.subr.mxu0 0.0
        %821 = vmatpush1.msra.mxu0 0.0
        %822 = vmatprep.subr.mxu0 0.0
        %823 = vmatpush1.msra.mxu0 0.0
        %824 = vmatprep.subr.mxu0 0.0
        %825 = vmatpush1.msra.mxu0 0.0
        %826 = vmatprep.subr.mxu0 0.0
        %827 = vmatpush1.msra.mxu0 0.0
        %828 = vmatprep.subr.mxu0 0.0
        %829 = vmatpush1.msra.mxu0 0.0
        %830 = vmatprep.subr.mxu0 0.0
        %831 = vmatpush1.msra.mxu0 0.0
        %832 = vmatprep.subr.mxu0 0.0
        %833 = vmatpush1.msra.mxu0 0.0
        %834 = vmatprep.subr.mxu0 0.0
        %835 = vmatpush1.msra.mxu0 0.0
        %836 = vmatprep.subr.mxu0 0.0
        %837 = vmatpush1.msra.mxu0 0.0
        %838 = vmatprep.subr.mxu0 0.0
        %839 = vmatpush1.msra.mxu0 0.0
        %840 = vmatprep.mubr.f32.mxu0 0.0
        %841 = vmatmul.mubr.f32.gmra.mrb[0].mxu0 %v774
        %v842 = vpop.f32.mrb[0].mxu0
        %v843 = vadd.f32 0.0, %v842
        %v844 = vpop.f32.mrb[0].mxu0
        %845 = vdwg.mxu0
        %846 = vrot.lane.b32.xlu0 %v339, 112
        %v847 = vpop.permute.xlu0 %846
        %v850 = vsel %vm344, %v692, 0
        %852 = vmatprep.subr.mxu0 0.0
        %853 = vmatpush1.msra.mxu0 %v847
        %854 = vmatprep.subr.mxu0 0.0
        %855 = vmatpush1.msra.mxu0 0.0
        %856 = vmatprep.subr.mxu0 0.0
        %857 = vmatpush1.msra.mxu0 0.0
        %858 = vmatprep.subr.mxu0 0.0
        %859 = vmatpush1.msra.mxu0 0.0
        %860 = vmatprep.subr.mxu0 0.0
        %861 = vmatpush1.msra.mxu0 0.0
        %862 = vmatprep.subr.mxu0 0.0
        %863 = vmatpush1.msra.mxu0 0.0
        %864 = vmatprep.subr.mxu0 0.0
        %865 = vmatpush1.msra.mxu0 0.0
        %866 = vmatprep.subr.mxu0 0.0
        %867 = vmatpush1.msra.mxu0 0.0
        %868 = vmatprep.subr.mxu0 0.0
        %869 = vmatpush1.msra.mxu0 0.0
        %870 = vmatprep.subr.mxu0 0.0
        %871 = vmatpush1.msra.mxu0 0.0
        %872 = vmatprep.subr.mxu0 0.0
        %873 = vmatpush1.msra.mxu0 0.0
        %874 = vmatprep.subr.mxu0 0.0
        %875 = vmatpush1.msra.mxu0 0.0
        %876 = vmatprep.subr.mxu0 0.0
        %877 = vmatpush1.msra.mxu0 0.0
        %878 = vmatprep.subr.mxu0 0.0
        %879 = vmatpush1.msra.mxu0 0.0
        %880 = vmatprep.subr.mxu0 0.0
        %881 = vmatpush1.msra.mxu0 0.0
        %882 = vmatprep.subr.mxu0 0.0
        %883 = vmatpush1.msra.mxu0 0.0
        %884 = vmatprep.subr.mxu0 0.0
        %885 = vmatpush1.msra.mxu0 0.0
        %886 = vmatprep.subr.mxu0 0.0
        %887 = vmatpush1.msra.mxu0 0.0
        %888 = vmatprep.subr.mxu0 0.0
        %889 = vmatpush1.msra.mxu0 0.0
        %890 = vmatprep.subr.mxu0 0.0
        %891 = vmatpush1.msra.mxu0 0.0
        %892 = vmatprep.subr.mxu0 0.0
        %893 = vmatpush1.msra.mxu0 0.0
        %894 = vmatprep.subr.mxu0 0.0
        %895 = vmatpush1.msra.mxu0 0.0
        %896 = vmatprep.subr.mxu0 0.0
        %897 = vmatpush1.msra.mxu0 0.0
        %898 = vmatprep.subr.mxu0 0.0
        %899 = vmatpush1.msra.mxu0 0.0
        %900 = vmatprep.subr.mxu0 0.0
        %901 = vmatpush1.msra.mxu0 0.0
        %902 = vmatprep.subr.mxu0 0.0
        %903 = vmatpush1.msra.mxu0 0.0
        %904 = vmatprep.subr.mxu0 0.0
        %905 = vmatpush1.msra.mxu0 0.0
        %906 = vmatprep.subr.mxu0 0.0
        %907 = vmatpush1.msra.mxu0 0.0
        %908 = vmatprep.subr.mxu0 0.0
        %909 = vmatpush1.msra.mxu0 0.0
        %910 = vmatprep.subr.mxu0 0.0
        %911 = vmatpush1.msra.mxu0 0.0
        %912 = vmatprep.subr.mxu0 0.0
        %913 = vmatpush1.msra.mxu0 0.0
        %914 = vmatprep.subr.mxu0 0.0
        %915 = vmatpush1.msra.mxu0 0.0
        %916 = vmatprep.mubr.f32.mxu0 0.0
        %917 = vmatmul.mubr.f32.gmra.mrb[0].mxu0 %v850
        %v918 = vpop.f32.mrb[0].mxu0
        %v919 = vadd.f32 0.0, %v918
        %v920 = vpop.f32.mrb[0].mxu0
        %921 = vdwg.mxu0
        %922 = vrot.lane.b32.xlu0 %v340, 112
        %v923 = vpop.permute.xlu0 %922
        %v926 = vsel %vm344, %v693, 0
        %928 = vmatprep.subr.mxu0 0.0
        %929 = vmatpush1.msra.mxu0 %v923
        %930 = vmatprep.subr.mxu0 0.0
        %931 = vmatpush1.msra.mxu0 0.0
        %932 = vmatprep.subr.mxu0 0.0
        %933 = vmatpush1.msra.mxu0 0.0
        %934 = vmatprep.subr.mxu0 0.0
        %935 = vmatpush1.msra.mxu0 0.0
        %936 = vmatprep.subr.mxu0 0.0
        %937 = vmatpush1.msra.mxu0 0.0
        %938 = vmatprep.subr.mxu0 0.0
        %939 = vmatpush1.msra.mxu0 0.0
        %940 = vmatprep.subr.mxu0 0.0
        %941 = vmatpush1.msra.mxu0 0.0
        %942 = vmatprep.subr.mxu0 0.0
        %943 = vmatpush1.msra.mxu0 0.0
        %944 = vmatprep.subr.mxu0 0.0
        %945 = vmatpush1.msra.mxu0 0.0
        %946 = vmatprep.subr.mxu0 0.0
        %947 = vmatpush1.msra.mxu0 0.0
        %948 = vmatprep.subr.mxu0 0.0
        %949 = vmatpush1.msra.mxu0 0.0
        %950 = vmatprep.subr.mxu0 0.0
        %951 = vmatpush1.msra.mxu0 0.0
        %952 = vmatprep.subr.mxu0 0.0
        %953 = vmatpush1.msra.mxu0 0.0
        %954 = vmatprep.subr.mxu0 0.0
        %955 = vmatpush1.msra.mxu0 0.0
        %956 = vmatprep.subr.mxu0 0.0
        %957 = vmatpush1.msra.mxu0 0.0
        %958 = vmatprep.subr.mxu0 0.0
        %959 = vmatpush1.msra.mxu0 0.0
        %960 = vmatprep.subr.mxu0 0.0
        %961 = vmatpush1.msra.mxu0 0.0
        %962 = vmatprep.subr.mxu0 0.0
        %963 = vmatpush1.msra.mxu0 0.0
        %964 = vmatprep.subr.mxu0 0.0
        %965 = vmatpush1.msra.mxu0 0.0
        %966 = vmatprep.subr.mxu0 0.0
        %967 = vmatpush1.msra.mxu0 0.0
        %968 = vmatprep.subr.mxu0 0.0
        %969 = vmatpush1.msra.mxu0 0.0
        %970 = vmatprep.subr.mxu0 0.0
        %971 = vmatpush1.msra.mxu0 0.0
        %972 = vmatprep.subr.mxu0 0.0
        %973 = vmatpush1.msra.mxu0 0.0
        %974 = vmatprep.subr.mxu0 0.0
        %975 = vmatpush1.msra.mxu0 0.0
        %976 = vmatprep.subr.mxu0 0.0
        %977 = vmatpush1.msra.mxu0 0.0
        %978 = vmatprep.subr.mxu0 0.0
        %979 = vmatpush1.msra.mxu0 0.0
        %980 = vmatprep.subr.mxu0 0.0
        %981 = vmatpush1.msra.mxu0 0.0
        %982 = vmatprep.subr.mxu0 0.0
        %983 = vmatpush1.msra.mxu0 0.0
        %984 = vmatprep.subr.mxu0 0.0
        %985 = vmatpush1.msra.mxu0 0.0
        %986 = vmatprep.subr.mxu0 0.0
        %987 = vmatpush1.msra.mxu0 0.0
        %988 = vmatprep.subr.mxu0 0.0
        %989 = vmatpush1.msra.mxu0 0.0
        %990 = vmatprep.subr.mxu0 0.0
        %991 = vmatpush1.msra.mxu0 0.0
        %992 = vmatprep.mubr.f32.mxu0 0.0
        %993 = vmatmul.mubr.f32.gmra.mrb[0].mxu0 %v926
        %v994 = vpop.f32.mrb[0].mxu0
        %v995 = vadd.f32 0.0, %v994
        %v996 = vpop.f32.mrb[0].mxu0
        %997 = vdwg.mxu0
        %998 = vst.msk [vmem:[#allocation3] sm:$0xff] %vm344, %v767
        %1000 = vrot.lane.b32.xlu0 %v843, 8
        %v1001 = vpop.permute.xlu0 %1000
        %vm1003 = vcmask 130112
        %1004 = vst.msk [vmem:[#allocation3] sm:$0xff] %vm1003, %v1001
        %1006 = vrot.lane.b32.xlu0 %v919, 16
        %v1007 = vpop.permute.xlu0 %1006
        %vm1009 = vcmask 195712
        %1010 = vst.msk [vmem:[#allocation3] sm:$0xff] %vm1009, %v1007
        %1012 = vrot.lane.b32.xlu0 %v995, 24
        %v1013 = vpop.permute.xlu0 %1012
        %vm1015 = vcmask 261312
        %1016 = vst.msk [vmem:[#allocation3] sm:$0xff] %vm1015, %v1013
        %v1017 = vld [vmem:[#allocation3] sm:$0xff]
        %v1018 = vld [vmem:[%s2] sm:$0xff]
        %v1019 = vld [vmem:[%s2 + $0x8] sm:$0xff]
        %v1020 = vld [vmem:[%s2 + $0x10] sm:$0xff]
        %v1021 = vld [vmem:[%s2 + $0x18] sm:$0xff]
        %v1023 = vsel %vm245, %v1017, 0
        %1025 = vmatprep.subr.mxu0 0.0
        %1026 = vmatpush1.msra.mxu0 %v1018
        %1027 = vmatprep.subr.mxu0 0.0
        %1028 = vmatpush1.msra.mxu0 %v1019
        %1029 = vmatprep.subr.mxu0 0.0
        %1030 = vmatpush1.msra.mxu0 %v1020
        %1031 = vmatprep.subr.mxu0 0.0
        %1032 = vmatpush1.msra.mxu0 %v1021
        %1033 = vmatprep.subr.mxu0 0.0
        %1034 = vmatpush1.msra.mxu0 0.0
        %1035 = vmatprep.subr.mxu0 0.0
        %1036 = vmatpush1.msra.mxu0 0.0
        %1037 = vmatprep.subr.mxu0 0.0
        %1038 = vmatpush1.msra.mxu0 0.0
        %1039 = vmatprep.subr.mxu0 0.0
        %1040 = vmatpush1.msra.mxu0 0.0
        %1041 = vmatprep.subr.mxu0 0.0
        %1042 = vmatpush1.msra.mxu0 0.0
        %1043 = vmatprep.subr.mxu0 0.0
        %1044 = vmatpush1.msra.mxu0 0.0
        %1045 = vmatprep.subr.mxu0 0.0
        %1046 = vmatpush1.msra.mxu0 0.0
        %1047 = vmatprep.subr.mxu0 0.0
        %1048 = vmatpush1.msra.mxu0 0.0
        %1049 = vmatprep.subr.mxu0 0.0
        %1050 = vmatpush1.msra.mxu0 0.0
        %1051 = vmatprep.subr.mxu0 0.0
        %1052 = vmatpush1.msra.mxu0 0.0
        %1053 = vmatprep.subr.mxu0 0.0
        %1054 = vmatpush1.msra.mxu0 0.0
        %1055 = vmatprep.subr.mxu0 0.0
        %1056 = vmatpush1.msra.mxu0 0.0
        %1057 = vmatprep.subr.mxu0 0.0
        %1058 = vmatpush1.msra.mxu0 0.0
        %1059 = vmatprep.subr.mxu0 0.0
        %1060 = vmatpush1.msra.mxu0 0.0
        %1061 = vmatprep.subr.mxu0 0.0
        %1062 = vmatpush1.msra.mxu0 0.0
        %1063 = vmatprep.subr.mxu0 0.0
        %1064 = vmatpush1.msra.mxu0 0.0
        %1065 = vmatprep.subr.mxu0 0.0
        %1066 = vmatpush1.msra.mxu0 0.0
        %1067 = vmatprep.subr.mxu0 0.0
        %1068 = vmatpush1.msra.mxu0 0.0
        %1069 = vmatprep.subr.mxu0 0.0
        %1070 = vmatpush1.msra.mxu0 0.0
        %1071 = vmatprep.subr.mxu0 0.0
        %1072 = vmatpush1.msra.mxu0 0.0
        %1073 = vmatprep.subr.mxu0 0.0
        %1074 = vmatpush1.msra.mxu0 0.0
        %1075 = vmatprep.subr.mxu0 0.0
        %1076 = vmatpush1.msra.mxu0 0.0
        %1077 = vmatprep.subr.mxu0 0.0
        %1078 = vmatpush1.msra.mxu0 0.0
        %1079 = vmatprep.subr.mxu0 0.0
        %1080 = vmatpush1.msra.mxu0 0.0
        %1081 = vmatprep.subr.mxu0 0.0
        %1082 = vmatpush1.msra.mxu0 0.0
        %1083 = vmatprep.subr.mxu0 0.0
        %1084 = vmatpush1.msra.mxu0 0.0
        %1085 = vmatprep.subr.mxu0 0.0
        %1086 = vmatpush1.msra.mxu0 0.0
        %1087 = vmatprep.subr.mxu0 0.0
        %1088 = vmatpush1.msra.mxu0 0.0
        %1089 = vmatprep.mubr.f32.mxu0 0.0
        %1090 = vmatmul.mubr.f32.gmra.mrb[0].mxu0 %v1023
        %v1091 = vpop.f32.mrb[0].mxu0
        %v1092 = vadd.f32 0.0, %v1091
        %v1093 = vpop.f32.mrb[0].mxu0
        %1094 = vdwg.mxu0
        %v1095 = vadd.f32 %v240, %v1092
        %v1096 = vsel %vm245, %v1095, 0.0
        %1097 = vadd.xlane.f32.xlu0 %v1096
        %v1098 = vpop.xlane.xlu0 %1097
        %v1099 = vrcp.pop 32.0
        %v1100 = vmul.f32 %v1098, %v1099
        %v1101 = vsub.f32 %v1095, %v1100
        %v1102 = vmul.f32 %v1101, %v1101
        %v1103 = vsel %vm245, %v1102, 0.0
        %1104 = vadd.xlane.f32.xlu0 %v1103
        %v1105 = vpop.xlane.xlu0 %1104
        %v1106 = vmul.f32 %v1105, %v1099
        %v1107 = vadd.f32 %v1106, 1e-05
        %v1108 = vrsqrt.pop %v1107
        %v1109 = vmul.f32 %v1101, %v1108
        %v1110 = vld [vmem:[%s3] sm:$0xff]
        %v1111 = vld [vmem:[%s3 + $0x8] sm:$0xff]
        %v1112 = vld [vmem:[%s3 + $0x10] sm:$0xff]
        %v1113 = vld [vmem:[%s3 + $0x18] sm:$0xff]
        %v1115 = vsel %vm245, %v1109, 0
        %1117 = vmatprep.subr.mxu0 0.0
        %1118 = vmatpush1.msra.mxu0 %v1110
        %1119 = vmatprep.subr.mxu0 0.0
        %1120 = vmatpush1.msra.mxu0 %v1111
        %1121 = vmatprep.subr.mxu0 0.0
        %1122 = vmatpush1.msra.mxu0 %v1112
        %1123 = vmatprep.subr.mxu0 0.0
        %1124 = vmatpush1.msra.mxu0 %v1113
        %1125 = vmatprep.subr.mxu0 0.0
        %1126 = vmatpush1.msra.mxu0 0.0
        %1127 = vmatprep.subr.mxu0 0.0
        %1128 = vmatpush1.msra.mxu0 0.0
        %1129 = vmatprep.subr.mxu0 0.0
        %1130 = vmatpush1.msra.mxu0 0.0
        %1131 = vmatprep.subr.mxu0 0.0
        %1132 = vmatpush1.msra.mxu0 0.0
        %1133 = vmatprep.subr.mxu0 0.0
        %1134 = vmatpush1.msra.mxu0 0.0
        %1135 = vmatprep.subr.mxu0 0.0
        %1136 = vmatpush1.msra.mxu0 0.0
        %1137 = vmatprep.subr.mxu0 0.0
        %1138 = vmatpush1.msra.mxu0 0.0
        %1139 = vmatprep.subr.mxu0 0.0
        %1140 = vmatpush1.msra.mxu0 0.0
        %1141 = vmatprep.subr.mxu0 0.0
        %1142 = vmatpush1.msra.mxu0 0.0
        %1143 = vmatprep.subr.mxu0 0.0
        %1144 = vmatpush1.msra.mxu0 0.0
        %1145 = vmatprep.subr.mxu0 0.0
        %1146 = vmatpush1.msra.mxu0 0.0
        %1147 = vmatprep.subr.mxu0 0.0
        %1148 = vmatpush1.msra.mxu0 0.0
        %1149 = vmatprep.subr.mxu0 0.0
        %1150 = vmatpush1.msra.mxu0 0.0
        %1151 = vmatprep.subr.mxu0 0.0
        %1152 = vmatpush1.msra.mxu0 0.0
        %1153 = vmatprep.subr.mxu0 0.0
        %1154 = vmatpush1.msra.mxu0 0.0
        %1155 = vmatprep.subr.mxu0 0.0
        %1156 = vmatpush1.msra.mxu0 0.0
        %1157 = vmatprep.subr.mxu0 0.0
        %1158 = vmatpush1.msra.mxu0 0.0
        %1159 = vmatprep.subr.mxu0 0.0
        %1160 = vmatpush1.msra.mxu0 0.0
        %1161 = vmatprep.subr.mxu0 0.0
        %1162 = vmatpush1.msra.mxu0 0.0
        %1163 = vmatprep.subr.mxu0 0.0
        %1164 = vmatpush1.msra.mxu0 0.0
        %1165 = vmatprep.subr.mxu0 0.0
        %1166 = vmatpush1.msra.mxu0 0.0
        %1167 = vmatprep.subr.mxu0 0.0
        %1168 = vmatpush1.msra.mxu0 0.0
        %1169 = vmatprep.subr.mxu0 0.0
        %1170 = vmatpush1.msra.mxu0 0.0
        %1171 = vmatprep.subr.mxu0 0.0
        %1172 = vmatpush1.msra.mxu0 0.0
        %1173 = vmatprep.subr.mxu0 0.0
        %1174 = vmatpush1.msra.mxu0 0.0
        %1175 = vmatprep.subr.mxu0 0.0
        %1176 = vmatpush1.msra.mxu0 0.0
        %1177 = vmatprep.subr.mxu0 0.0
        %1178 = vmatpush1.msra.mxu0 0.0
        %1179 = vmatprep.subr.mxu0 0.0
        %1180 = vmatpush1.msra.mxu0 0.0
        %1181 = vmatprep.mubr.f32.mxu0 0.0
        %1182 = vmatmul.mubr.f32.gmra.mrb[0].mxu0 %v1115
        %v1183 = vpop.f32.mrb[0].mxu0
        %v1184 = vadd.f32 0.0, %v1183
        %v1185 = vpop.f32.mrb[0].mxu0
        %1186 = vdwg.mxu0
        %v1187 = vmax.f32 %v1184, 0.0
        %v1188 = vld [vmem:[%s4] sm:$0xff]
        %v1189 = vld [vmem:[%s4 + $0x8] sm:$0xff]
        %v1190 = vld [vmem:[%s4 + $0x10] sm:$0xff]
        %v1191 = vld [vmem:[%s4 + $0x18] sm:$0xff]
        %v1192 = vld [vmem:[%s4 + $0x20] sm:$0xff]
        %v1193 = vld [vmem:[%s4 + $0x28] sm:$0xff]
        %v1194 = vld [vmem:[%s4 + $0x30] sm:$0xff]
        %v1195 = vld [vmem:[%s4 + $0x38] sm:$0xff]
        %vm1196 = vcmask 523264
        %v1198 = vsel %vm1196, %v1187, 0
        %1200 = vmatprep.subr.mxu0 0.0
        %1201 = vmatpush1.msra.mxu0 %v1188
        %1202 = vmatprep.subr.mxu0 0.0
        %1203 = vmatpush1.msra.mxu0 %v1189
        %1204 = vmatprep.subr.mxu0 0.0
        %1205 = vmatpush1.msra.mxu0 %v1190
        %1206 = vmatprep.subr.mxu0 0.0
        %1207 = vmatpush1.msra.mxu0 %v1191
        %1208 = vmatprep.subr.mxu0 0.0
        %1209 = vmatpush1.msra.mxu0 %v1192
        %1210 = vmatprep.subr.mxu0 0.0
        %1211 = vmatpush1.msra.mxu0 %v1193
        %1212 = vmatprep.subr.mxu0 0.0
        %1213 = vmatpush1.msra.mxu0 %v1194
        %1214 = vmatprep.subr.mxu0 0.0
        %1215 = vmatpush1.msra.mxu0 %v1195
        %1216 = vmatprep.subr.mxu0 0.0
        %1217 = vmatpush1.msra.mxu0 0.0
        %1218 = vmatprep.subr.mxu0 0.0
        %1219 = vmatpush1.msra.mxu0 0.0
        %1220 = vmatprep.subr.mxu0 0.0
        %1221 = vmatpush1.msra.mxu0 0.0
        %1222 = vmatprep.subr.mxu0 0.0
        %1223 = vmatpush1.msra.mxu0 0.0
        %1224 = vmatprep.subr.mxu0 0.0
        %1225 = vmatpush1.msra.mxu0 0.0
        %1226 = vmatprep.subr.mxu0 0.0
        %1227 = vmatpush1.msra.mxu0 0.0
        %1228 = vmatprep.subr.mxu0 0.0
        %1229 = vmatpush1.msra.mxu0 0.0
        %1230 = vmatprep.subr.mxu0 0.0
        %1231 = vmatpush1.msra.mxu0 0.0
        %1232 = vmatprep.subr.mxu0 0.0
        %1233 = vmatpush1.msra.mxu0 0.0
        %1234 = vmatprep.subr.mxu0 0.0
        %1235 = vmatpush1.msra.mxu0 0.0
        %1236 = vmatprep.subr.mxu0 0.0
        %1237 = vmatpush1.msra.mxu0 0.0
        %1238 = vmatprep.subr.mxu0 0.0
        %1239 = vmatpush1.msra.mxu0 0.0
        %1240 = vmatprep.subr.mxu0 0.0
        %1241 = vmatpush1.msra.mxu0 0.0
        %1242 = vmatprep.subr.mxu0 0.0
        %1243 = vmatpush1.msra.mxu0 0.0
        %1244 = vmatprep.subr.mxu0 0.0
        %1245 = vmatpush1.msra.mxu0 0.0
        %1246 = vmatprep.subr.mxu0 0.0
        %1247 = vmatpush1.msra.mxu0 0.0
        %1248 = vmatprep.subr.mxu0 0.0
        %1249 = vmatpush1.msra.mxu0 0.0
        %1250 = vmatprep.subr.mxu0 0.0
        %1251 = vmatpush1.msra.mxu0 0.0
        %1252 = vmatprep.subr.mxu0 0.0
        %1253 = vmatpush1.msra.mxu0 0.0
        %1254 = vmatprep.subr.mxu0 0.0
        %1255 = vmatpush1.msra.mxu0 0.0
        %1256 = vmatprep.subr.mxu0 0.0
        %1257 = vmatpush1.msra.mxu0 0.0
        %1258 = vmatprep.subr.mxu0 0.0
        %1259 = vmatpush1.msra.mxu0 0.0
        %1260 = vmatprep.subr.mxu0 0.0
        %1261 = vmatpush1.msra.mxu0 0.0
        %1262 = vmatprep.subr.mxu0 0.0
        %1263 = vmatpush1.msra.mxu0 0.0
        %1264 = vmatprep.mubr.f32.mxu0 0.0
        %1265 = vmatmul.mubr.f32.gmra.mrb[0].mxu0 %v1198
        %v1266 = vpop.f32.mrb[0].mxu0
        %v1267 = vadd.f32 0.0, %v1266
        %v1268 = vpop.f32.mrb[0].mxu0
        %1269 = vdwg.mxu0
        %v1270 = vadd.f32 %v1109, %v1267
        %v1271 = vsel %vm245, %v1270, 0.0
        %1272 = vadd.xlane.f32.xlu0 %v1271
        %v1273 = vpop.xlane.xlu0 %1272
        %v1274 = vmul.f32 %v1273, %v1099
        %v1275 = vsub.f32 %v1270, %v1274
        %v1276 = vmul.f32 %v1275, %v1275
        %v1277 = vsel %vm245, %v1276, 0.0
        %1278 = vadd.xlane.f32.xlu0 %v1277
        %v1279 = vpop.xlane.xlu0 %1278
        %v1280 = vmul.f32 %v1279, %v1099
        %v1281 = vadd.f32 %v1280, 1e-05
        %v1282 = vrsqrt.pop %v1281
        %v1283 = vmul.f32 %v1275, %v1282
        %1284 = vst.msk [vmem:[%s239] sm:$0xff] %vm245, %v1283
        %s1285 = sand.u32 %s140, 1
        %s1286 = scalar_lea.sflag [#allocation6], %s1285
        %s1287 = sand.u32 %s140, 1
        %s1288 = smul.addr %s1287, 8
        %s1289 = scalar_lea.vmem [#allocation7], %s1288
        // Predicated region
        $region45: #{tpu_custom_call.1} parent=39 // pred_check
          %p1290 = pneg %p150
        $region46: #{tpu_custom_call.1} parent=39 // pred_check_branch
          %1292 = sbr.rel (%p1290) target = $region48
        $region47: #{tpu_custom_call.1} parent=39 // pred_region
          %s1294 = ssub.s32 128, 128
          %1295 = vsyncadd %s1286, %s1294
          %s1296 = smul.addr %s22, 128
          %s1297 = scalar_lea.hbm %s5, %s1296
          %s1299 = sshll.u32 %s1289, 4
          %s1300 = int_to_ptr.vmem [resolvable:$true] %s1299
          %1302 = dma.vmem_to_hbm [thread:$0]  %s1300, 128, %s1297, %s1286
        $region48: #{tpu_custom_call.1} parent=39 // pred_fallthru
          _
      $region40: #{tpu_custom_call.1} parent=5 // pred_fallthru
        _
      %p1303 = scmp.le.s32.totalorder 2, %s17
      // Predicated region
      $region49: #{tpu_custom_call.1} parent=5 // pred_check
        %p1304 = pneg %p1303
      $region50: #{tpu_custom_call.1} parent=5 // pred_check_branch
        %1306 = sbr.rel (%p1304) target = $region52
      $region51: #{tpu_custom_call.1} parent=5 // pred_region
        %s1307 = ssub.s32 %s17, 2
        // Predicated region
        $region53: #{tpu_custom_call.1} parent=51 // pred_check
          %p1308 = pneg %p156
        $region54: #{tpu_custom_call.1} parent=51 // pred_check_branch
          %1310 = sbr.rel (%p1308) target = $region56
        $region55: #{tpu_custom_call.1} parent=51 // pred_region
          %s1311 = sand.u32 %s141, 1
          %s1312 = scalar_lea.sflag [#allocation6], %s1311
          %s1313 = sand.u32 %s141, 1
          %s1314 = smul.addr %s1313, 8
          %s1315 = scalar_lea.vmem [#allocation7], %s1314
          %1316 = dma.done %s1312, 128
        $region56: #{tpu_custom_call.1} parent=51 // pred_fallthru
          _
      $region52: #{tpu_custom_call.1} parent=5 // pred_fallthru
        _
    $region6: #{tpu_custom_call.1} parent=1 // loop_footer
      %s21 = sadd.s32 1, %s17
    $region7: #{tpu_custom_call.1} parent=1 // loop_footer_branch
      %16 = sbr.rel target = $region3
    $region8: #{tpu_custom_call.1} parent=1 // loop_exit
      _
    %1317 = vsyncpa [#allocation5], 1
    %s1318 = scalar_lea.sflag [#allocation5], 1
    %1319 = vsyncpa %s1318, 1
    %1320 = vsyncpa [#allocation6], 1
    %s1321 = scalar_lea.sflag [#allocation6], 1
    %1322 = vsyncpa %s1321, 1

</llo_original>
